<compile_context>
chip_gen: v5e
topology: v5e:2x2
jax: 0.10.0
libtpu: 0.0.40
codegen_flags: <defaults>
</compile_context>

<pallas_src>
import jax
import jax.numpy as jnp
from jax.experimental import pallas as pl
from jax.experimental.pallas import tpu as pltpu

_LANES = 128
_ACC_ROWS = 32          # resident accumulator rows per split (4 f32 vregs)


def _round_up(x: int, m: int) -> int:
    return -(-x // m) * m


def logits_kd_loss(out_s: jax.Array, out_t: jax.Array, *,
                   min_kernel_elems: int = 1 << 16,
                   num_splits: int = 2,
                   buffer_budget_bytes: int = 24 * 1024 * 1024) -> jax.Array:
    """Pallas TPU implementation of F.mse_loss(out_s, out_t) (mean reduction)."""
    assert out_s.shape == out_t.shape, "student/teacher logits must match shape"
    n_total = int(out_s.size)
    assert n_total > 0, "empty input"
    inv_n = 1.0 / float(n_total)

    # ---- small-input fast path: launch overhead > work for classic logits ----
    if n_total <= min_kernel_elems:
        d = out_s.astype(jnp.float32) - out_t.astype(jnp.float32)
        return jnp.mean(d * d)

    s = out_s.reshape(-1)
    t = out_t.reshape(-1)
    n_aligned = (n_total // _LANES) * _LANES     # elements handled by the kernel
    partial_sums = []

    # ---- < 128-element lane tail: tiny jnp reduction (no input copy/pad) ----
    if n_aligned < n_total:
        dt = s[n_aligned:].astype(jnp.float32) - t[n_aligned:].astype(jnp.float32)
        partial_sums.append(jnp.sum(dt * dt))

    if n_aligned > 0:
        rows = n_aligned // _LANES
        s2 = (s[:n_aligned] if n_aligned < n_total else s).reshape(rows, _LANES)
        t2 = (t[:n_aligned] if n_aligned < n_total else t).reshape(rows, _LANES)

        # ---- block sizing: 2 inputs x 2 pipeline buffers within the budget ----
        isz_s = int(jnp.dtype(out_s.dtype).itemsize)
        isz_t = int(jnp.dtype(out_t.dtype).itemsize)
        bytes_per_row = _LANES * (isz_s + isz_t)
        block_rows = max(
            _ACC_ROWS,
            (buffer_budget_bytes // (2 * bytes_per_row)) // _ACC_ROWS * _ACC_ROWS)
        per_split_rows = _round_up(-(-rows // max(1, num_splits)), _ACC_ROWS)
        block_rows = min(block_rows, per_split_rows)

        total_blocks = -(-rows // block_rows)
        splits = max(1, min(num_splits, total_blocks))
        inner = -(-total_blocks // splits)
        # masking needed iff the last block is partial or a split re-reads a
        # (clamped) block it must ignore.
        need_mask = (rows % block_rows != 0) or (splits * inner != total_blocks)

        def mse_partial_kernel(s_ref, t_ref, o_ref):
            c = pl.program_id(0)
            i = pl.program_id(1)

            @pl.when(i == 0)
            def _():
                o_ref[...] = jnp.zeros_like(o_ref)

            d = s_ref[...].astype(jnp.float32) - t_ref[...].astype(jnp.float32)
            sq = d * d

            if need_mask:
                # rows still valid in this (unclamped) global block
                valid = rows - (c * inner + i) * block_rows

                @pl.when(valid >= block_rows)
                def _():
                    o_ref[...] += jnp.sum(
                        sq.reshape(-1, _ACC_ROWS, _LANES), axis=0)

                @pl.when(valid < block_rows)
                def _():
                    ridx = jax.lax.broadcasted_iota(
                        jnp.int32, (block_rows, _LANES), 0)
                    msq = jnp.where(ridx < valid, sq, jnp.float32(0.0))
                    o_ref[...] += jnp.sum(
                        msq.reshape(-1, _ACC_ROWS, _LANES), axis=0)
            else:
                o_ref[...] += jnp.sum(sq.reshape(-1, _ACC_ROWS, _LANES), axis=0)

        def in_map(c, i):
            # clamp so every DMA window starts inside the array; out-of-range
            # grid points re-read the last block and are masked to zero above.
            return (jnp.minimum(c * inner + i, total_blocks - 1), 0)

        partials = pl.pallas_call(
            mse_partial_kernel,
            out_shape=jax.ShapeDtypeStruct((splits * _ACC_ROWS, _LANES),
                                           jnp.float32),
            grid_spec=pltpu.PrefetchScalarGridSpec(
                num_scalar_prefetch=0,
                grid=(splits, inner),
                in_specs=[
                    pl.BlockSpec((block_rows, _LANES), in_map),
                    pl.BlockSpec((block_rows, _LANES), in_map),
                ],
                # same output block across the inner (reduction) axis ->
                # resident accumulator; one block per split.
                out_specs=pl.BlockSpec((_ACC_ROWS, _LANES), lambda c, i: (c, 0)),
            ),
            compiler_params=pltpu.CompilerParams(
                dimension_semantics=("parallel", "arbitrary"),
                vmem_limit_bytes=40 * 1024 * 1024,
            ),
        )(s2, t2)
        partial_sums.append(jnp.sum(partials))

    total = partial_sums[0]
    for p in partial_sums[1:]:
        total = total + p
    return total * inv_n


if __name__ == "__main__":
    key = jax.random.PRNGKey(0)
    k1, k2, k3, k4, k5, k6, k7, k8 = jax.random.split(key, 8)

    def ref_mse(a, b):
        d = a.astype(jnp.float32) - b.astype(jnp.float32)
        return jnp.mean(d * d)

    # 1) Typical logits batch: large enough to take the Pallas streaming path.
    s_big = jax.random.normal(k1, (256, 1000), dtype=jnp.float32)
    t_big = jax.random.normal(k2, (256, 1000), dtype=jnp.float32)
    loss = logits_kd_loss(s_big, t_big)
    jax.block_until_ready(loss)
    assert jnp.allclose(loss, ref_mse(s_big, t_big), rtol=1e-5, atol=1e-6), (
        loss, ref_mse(s_big, t_big))

    # 2) Small logits (batch=16, classes=32): fast path, no kernel launch.
    s_small = jax.random.normal(k3, (16, 32), dtype=jnp.float32)
    t_small = jax.random.normal(k4, (16, 32), dtype=jnp.float32)
    loss2 = logits_kd_loss(s_small, t_small)
    jax.block_until_ready(loss2)
    assert jnp.allclose(loss2, ref_mse(s_small, t_small), rtol=1e-5, atol=1e-6)

    # 3) Odd shape forced through the kernel: lane tail + in-kernel row mask.
    s_odd = jax.random.normal(k5, (37, 129), dtype=jnp.float32)
    t_odd = jax.random.normal(k6, (37, 129), dtype=jnp.float32)
    loss3 = logits_kd_loss(s_odd, t_odd, min_kernel_elems=0)
    jax.block_until_ready(loss3)
    assert jnp.allclose(loss3, ref_mse(s_odd, t_odd), rtol=1e-5, atol=1e-6)

    # 4) bf16 logits forced through the kernel.
    s_bf = jax.random.normal(k7, (48, 1000), dtype=jnp.bfloat16)
    t_bf = jax.random.normal(k8, (48, 1000), dtype=jnp.bfloat16)
    loss4 = logits_kd_loss(s_bf, t_bf, min_kernel_elems=0)
    jax.block_until_ready(loss4)
    assert jnp.allclose(loss4, ref_mse(s_bf, t_bf), rtol=1e-4, atol=1e-5)

    print("KERNEL_OK")
</pallas_src>

<mosaic_0001>
module attributes {stable_mosaic.version = 11 : i64} {
  func.func @mse_partial_kernel(%arg0: i32, %arg1: i32, %arg2: memref<1024x128xf32, #tpu.memory_space<vmem>>, %arg3: memref<1024x128xf32, #tpu.memory_space<vmem>>, %arg4: memref<32x128xf32, #tpu.memory_space<vmem>>) attributes {dimension_semantics = [#tpu.dimension_semantics<parallel>, #tpu.dimension_semantics<arbitrary>], iteration_bounds = array<i64: 2, 1>, scalar_prefetch = 0 : i64, scratch_operands = 0 : i64, tpu.core_type = #tpu.core_type<tc>, window_params = [{transform_indices = @transform_0, window_bounds = array<i64: 1024, 128>}, {transform_indices = @transform_1, window_bounds = array<i64: 1024, 128>}, {transform_indices = @transform_2, window_bounds = array<i64: 32, 128>}]} {
    %c0_i32 = arith.constant 0 : i32
    %0 = arith.cmpi eq, %arg1, %c0_i32 : i32
    %1 = arith.extui %0 : i1 to i32
    %c0_i32_0 = arith.constant 0 : i32
    %2 = arith.cmpi ne, %1, %c0_i32_0 : i32
    scf.if %2 {
      %cst = arith.constant 0.000000e+00 : f32
      %17 = vector.broadcast %cst : f32 to vector<32x128xf32>
      %c0_8 = arith.constant 0 : index
      %c0_9 = arith.constant 0 : index
      %18 = vector.load %arg4[%c0_8, %c0_9] : memref<32x128xf32, #tpu.memory_space<vmem>>, vector<32x128xf32>
      tpu.vector_store %arg4[%c0_8, %c0_9], %17 {strides = array<i32>} : memref<32x128xf32, #tpu.memory_space<vmem>>, vector<32x128xf32>,
    } else {
    }
    %c0 = arith.constant 0 : index
    %c0_1 = arith.constant 0 : index
    %3 = vector.load %arg2[%c0, %c0_1] : memref<1024x128xf32, #tpu.memory_space<vmem>>, vector<1024x128xf32>
    %c0_2 = arith.constant 0 : index
    %c0_3 = arith.constant 0 : index
    %4 = vector.load %arg3[%c0_2, %c0_3] : memref<1024x128xf32, #tpu.memory_space<vmem>>, vector<1024x128xf32>
    %5 = arith.subf %3, %4 : vector<1024x128xf32>
    %6 = arith.mulf %5, %5 : vector<1024x128xf32>
    %c1_i32 = arith.constant 1 : i32
    %7 = arith.muli %arg0, %c1_i32 : i32
    %8 = arith.addi %7, %arg1 : i32
    %c1024_i32 = arith.constant 1024 : i32
    %9 = arith.muli %8, %c1024_i32 : i32
    %c2000_i32 = arith.constant 2000 : i32
    %10 = arith.subi %c2000_i32, %9 : i32
    %c1024_i32_4 = arith.constant 1024 : i32
    %11 = arith.cmpi sge, %10, %c1024_i32_4 : i32
    %12 = arith.extui %11 : i1 to i32
    %c0_i32_5 = arith.constant 0 : i32
    %13 = arith.cmpi ne, %12, %c0_i32_5 : i32
    scf.if %13 {
      %c0_8 = arith.constant 0 : index
      %c0_9 = arith.constant 0 : index
      %17 = vector.load %arg4[%c0_8, %c0_9] : memref<32x128xf32, #tpu.memory_space<vmem>>, vector<32x128xf32>
      %18 = vector.shape_cast %6 : vector<1024x128xf32> to vector<32x32x128xf32>
      %cst = arith.constant dense<0.000000e+00> : vector<32x128xf32>
      %19 = vector.multi_reduction <add>, %18, %cst [0] : vector<32x32x128xf32> to vector<32x128xf32>
      %20 = arith.addf %17, %19 : vector<32x128xf32>
      %c0_10 = arith.constant 0 : index
      %c0_11 = arith.constant 0 : index
      %21 = vector.load %arg4[%c0_10, %c0_11] : memref<32x128xf32, #tpu.memory_space<vmem>>, vector<32x128xf32>
      tpu.vector_store %arg4[%c0_10, %c0_11], %20 {strides = array<i32>} : memref<32x128xf32, #tpu.memory_space<vmem>>, vector<32x128xf32>,
    } else {
    }
    %c1024_i32_6 = arith.constant 1024 : i32
    %14 = arith.cmpi slt, %10, %c1024_i32_6 : i32
    %15 = arith.extui %14 : i1 to i32
    %c0_i32_7 = arith.constant 0 : i32
    %16 = arith.cmpi ne, %15, %c0_i32_7 : i32
    scf.if %16 {
      %17 = tpu.iota {dimensions = array<i32: 0>} : vector<1024x128xi32>
      %18 = vector.broadcast %10 : i32 to vector<1024x128xi32>
      %19 = arith.cmpi slt, %17, %18 : vector<1024x128xi32>
      %cst = arith.constant 0.000000e+00 : f32
      %20 = vector.broadcast %cst : f32 to vector<1024x128xf32>
      %21 = arith.select %19, %6, %20 : vector<1024x128xi1>, vector<1024x128xf32>
      %c0_8 = arith.constant 0 : index
      %c0_9 = arith.constant 0 : index
      %22 = vector.load %arg4[%c0_8, %c0_9] : memref<32x128xf32, #tpu.memory_space<vmem>>, vector<32x128xf32>
      %23 = vector.shape_cast %21 : vector<1024x128xf32> to vector<32x32x128xf32>
      %cst_10 = arith.constant dense<0.000000e+00> : vector<32x128xf32>
      %24 = vector.multi_reduction <add>, %23, %cst_10 [0] : vector<32x32x128xf32> to vector<32x128xf32>
      %25 = arith.addf %22, %24 : vector<32x128xf32>
      %c0_11 = arith.constant 0 : index
      %c0_12 = arith.constant 0 : index
      %26 = vector.load %arg4[%c0_11, %c0_12] : memref<32x128xf32, #tpu.memory_space<vmem>>, vector<32x128xf32>
      tpu.vector_store %arg4[%c0_11, %c0_12], %25 {strides = array<i32>} : memref<32x128xf32, #tpu.memory_space<vmem>>, vector<32x128xf32>,
    } else {
    }
    return
  }
  func.func @transform_0(%arg0: i32, %arg1: i32) -> (i32, i32) {
    %c1_i32 = arith.constant 1 : i32
    %0 = arith.muli %arg0, %c1_i32 : i32
    %1 = arith.addi %0, %arg1 : i32
    %c1_i32_0 = arith.constant 1 : i32
    %2 = arith.minsi %1, %c1_i32_0 : i32
    %c0_i32 = arith.constant 0 : i32
    %c0_i32_1 = arith.constant 0 : i32
    return %2, %c0_i32 : i32, i32
  }
  func.func @transform_1(%arg0: i32, %arg1: i32) -> (i32, i32) {
    %c1_i32 = arith.constant 1 : i32
    %0 = arith.muli %arg0, %c1_i32 : i32
    %1 = arith.addi %0, %arg1 : i32
    %c1_i32_0 = arith.constant 1 : i32
    %2 = arith.minsi %1, %c1_i32_0 : i32
    %c0_i32 = arith.constant 0 : i32
    %c0_i32_1 = arith.constant 0 : i32
    return %2, %c0_i32 : i32, i32
  }
  func.func @transform_2(%arg0: i32, %arg1: i32) -> (i32, i32) {
    %c0_i32 = arith.constant 0 : i32
    %c0_i32_0 = arith.constant 0 : i32
    return %arg0, %c0_i32 : i32, i32
  }
}

</mosaic_0001>

<llo_original>
// kernel: tpu_custom_call.1
$region0: #{tpu_custom_call.1}
  #allocation0 [shape = 'u32[]', space=smem, size = 0x4, offset = 0x4, fixed_abs, tag = 'smem constant byte address 0x4 - core index']
  #allocation1 [shape = 'u32[72,128]{1,0:T(1,128)}', space=vmem, size = 0x9000, scoped, tag = 'internal scratch']
  %s0 = inlined_call_operand.hbm [shape: f32[2000,128], index: 0, kind: input, shape index: {}]
  %s1 = inlined_call_operand.hbm [shape: f32[2000,128], index: 1, kind: input, shape index: {}]
  %s2 = inlined_call_operand.hbm [shape: f32[64,128], index: 2, kind: output, shape index: {}]
  %s3 = sld [smem:[#allocation0]]
  $region61: #{tpu_custom_call.1} parent=0
    _
  %s5 = ssub.s32 1, %s3
  %s6 = scalar_select 0, %s5, %s3
  $region1: #{tpu_custom_call.1} parent=0
    #allocation2 [shape = 'u8[1048576]{0}', space=vmem, size = 0x100000, scoped, tag = 'input window, operand 0']
    #allocation3 [shape = 's32[2]{0}', space=sflag, size = 0x8, scoped, tag = 'scoped memory for tpu_custom_call.1']
    #allocation4 [shape = 's32[2]{0}', space=sflag, size = 0x8, scoped, tag = 'scoped memory for tpu_custom_call.1']
    #allocation5 [shape = 'u8[1048576]{0}', space=vmem, size = 0x100000, scoped, tag = 'input window, operand 1']
    #allocation6 [shape = 's32[2]{0}', space=sflag, size = 0x8, scoped, tag = 'scoped memory for tpu_custom_call.1']
    #allocation7 [shape = 'u8[32768]{0}', space=vmem, size = 0x8000, scoped, tag = 'output window, operand 0']
    %7 = vsyncpa [#allocation3], 0
    %s8 = scalar_lea.sflag [#allocation3], 1
    %9 = vsyncpa %s8, 0
    %10 = vsyncpa [#allocation6], 0
    %s11 = scalar_lea.sflag [#allocation6], 1
    %12 = vsyncpa %s11, 0
    %13 = vsyncpa [#allocation4], 0
    %s14 = scalar_lea.sflag [#allocation4], 1
    %15 = vsyncpa %s14, 0
    loop: start=0, step=1, limit=4
    $region2: #{tpu_custom_call.1} parent=1 // loop_pre_header
      _
    $region3: #{tpu_custom_call.1} parent=1 // loop_header
      %s17 = sphi 0, %s21
      %p18 = scmp.ge.s32.totalorder %s17, 4
      %s24 = sphi 0, %s36
      %s25 = sphi 0, %s32
      %s26 = sphi 0, %s24
      %s27 = sphi 0, %s25
      %s28 = sphi 0, %s26
      %s29 = sphi 0, %s27
      %s45 = sphi 0, %s47
      %s48 = sphi 0, %s45
      %s49 = sphi 0, %s48
      %s65 = sphi 0, %s49
      %s77 = sphi 0, %s79
      %s80 = sphi 0, %s77
      %s81 = sphi 0, %s80
      %s97 = sphi 0, %s81
      %s103 = sphi 0, %s105
      %s106 = sphi 0, %s103
      %s107 = sphi 0, %s106
      %s123 = sphi 0, %s107
    $region4: #{tpu_custom_call.1} parent=1 // loop_header_branch
      %20 = sbr.rel (%p18) target = $region8
    $region5: #{tpu_custom_call.1} parent=1 // loop_body
      %s22 = ssub.s32 %s17, 1
      %s23 = ssub.s32 %s17, 2
      %s30 = sadd.s32 1, %s25
      %p31 = scmp.ge.s32.totalorder %s30, 1
      %s32 = scalar_select %p31, 0, %s30
      %s33 = sadd.s32 1, %s24
      %s34 = scalar_select %p31, %s33, %s24
      %p35 = scmp.ge.s32.totalorder %s34, 2
      %s36 = scalar_select %p35, 0, %s34
      %s37 = sadd.s32 %s24, %s25
      %p38 = scmp.lt.s32.totalorder %s37, 1
      %s39 = scalar_select %p38, %s37, 1
      %s40 = sadd.s32 %s36, %s32
      %p41 = scmp.lt.s32.totalorder %s40, 1
      %s42 = scalar_select %p41, %s40, 1
      %s43 = ssub.s32 %s39, %s42
      %p44 = scmp.eq.s32.totalorder %s43, 0
      %s46 = sadd.s32 %s45, 1
      %s47 = scalar_select %p44, %s45, %s46
      %p50 = pneg %p44
      %p51 = scmp.eq.s32.totalorder %s17, 1
      %p52 = por %p50, %p51
      %p53 = scmp.ne.s32.totalorder %s45, %s48
      %p54 = scmp.eq.s32.totalorder %s17, 0
      %p55 = por %p53, %p54
      %p56 = scmp.ne.s32.totalorder %s45, %s48
      %p57 = scmp.eq.s32.totalorder %s22, 1
      %p58 = por %p56, %p57
      %p59 = scmp.ne.s32.totalorder %s48, %s49
      %p60 = scmp.eq.s32.totalorder %s22, 0
      %p61 = por %p59, %p60
      %p62 = scmp.ne.s32.totalorder %s48, %s49
      %p63 = scmp.eq.s32.totalorder %s23, 1
      %p64 = por %p62, %p63
      %p66 = scmp.ne.s32.totalorder %s49, %s65
      %p67 = scmp.eq.s32.totalorder %s23, 0
      %p68 = por %p66, %p67
      %s69 = sadd.s32 %s24, %s25
      %p70 = scmp.lt.s32.totalorder %s69, 1
      %s71 = scalar_select %p70, %s69, 1
      %s72 = sadd.s32 %s36, %s32
      %p73 = scmp.lt.s32.totalorder %s72, 1
      %s74 = scalar_select %p73, %s72, 1
      %s75 = ssub.s32 %s71, %s74
      %p76 = scmp.eq.s32.totalorder %s75, 0
      %s78 = sadd.s32 %s77, 1
      %s79 = scalar_select %p76, %s77, %s78
      %p82 = pneg %p76
      %p83 = scmp.eq.s32.totalorder %s17, 1
      %p84 = por %p82, %p83
      %p85 = scmp.ne.s32.totalorder %s77, %s80
      %p86 = scmp.eq.s32.totalorder %s17, 0
      %p87 = por %p85, %p86
      %p88 = scmp.ne.s32.totalorder %s77, %s80
      %p89 = scmp.eq.s32.totalorder %s22, 1
      %p90 = por %p88, %p89
      %p91 = scmp.ne.s32.totalorder %s80, %s81
      %p92 = scmp.eq.s32.totalorder %s22, 0
      %p93 = por %p91, %p92
      %p94 = scmp.ne.s32.totalorder %s80, %s81
      %p95 = scmp.eq.s32.totalorder %s23, 1
      %p96 = por %p94, %p95
      %p98 = scmp.ne.s32.totalorder %s81, %s97
      %p99 = scmp.eq.s32.totalorder %s23, 0
      %p100 = por %p98, %p99
      %s101 = ssub.s32 %s24, %s36
      %p102 = scmp.eq.s32.totalorder %s101, 0
      %s104 = sadd.s32 %s103, 1
      %s105 = scalar_select %p102, %s103, %s104
      %p108 = pneg %p102
      %p109 = scmp.eq.s32.totalorder %s17, 1
      %p110 = por %p108, %p109
      %p111 = scmp.ne.s32.totalorder %s103, %s106
      %p112 = scmp.eq.s32.totalorder %s17, 0
      %p113 = por %p111, %p112
      %p114 = scmp.ne.s32.totalorder %s103, %s106
      %p115 = scmp.eq.s32.totalorder %s22, 1
      %p116 = por %p114, %p115
      %p117 = scmp.ne.s32.totalorder %s106, %s107
      %p118 = scmp.eq.s32.totalorder %s22, 0
      %p119 = por %p117, %p118
      %p120 = scmp.ne.s32.totalorder %s106, %s107
      %p121 = scmp.eq.s32.totalorder %s23, 1
      %p122 = por %p120, %p121
      %p124 = scmp.ne.s32.totalorder %s107, %s123
      %p125 = scmp.eq.s32.totalorder %s23, 0
      %p126 = por %p124, %p125
      %p127 = scmp.le.s32.totalorder 1, %s17
      %p128 = scmp.lt.s32.totalorder %s17, 3
      %p129 = pnand %p127, %p128
      %p130 = pneg %p129
      // Predicated region
      $region9: #{tpu_custom_call.1} parent=5 // pred_check
        _
      $region10: #{tpu_custom_call.1} parent=5 // pred_check_branch
        %132 = sbr.rel (%p129) target = $region12
      $region11: #{tpu_custom_call.1} parent=5 // pred_region
        %s133 = ssub.s32 %s17, 1
      $region12: #{tpu_custom_call.1} parent=5 // pred_fallthru
        _
      %p134 = scmp.lt.s32.totalorder %s17, 2
      // Predicated region
      $region13: #{tpu_custom_call.1} parent=5 // pred_check
        %p135 = pneg %p134
      $region14: #{tpu_custom_call.1} parent=5 // pred_check_branch
        %137 = sbr.rel (%p135) target = $region16
      $region15: #{tpu_custom_call.1} parent=5 // pred_region
        // Predicated region
        $region17: #{tpu_custom_call.1} parent=15 // pred_check
          %p138 = pneg %p55
        $region18: #{tpu_custom_call.1} parent=15 // pred_check_branch
          %140 = sbr.rel (%p138) target = $region20
        $region19: #{tpu_custom_call.1} parent=15 // pred_region
          %s141 = sand.u32 %s45, 1
          %s142 = scalar_lea.sflag [#allocation3], %s141
          %s143 = sand.u32 %s45, 1
          %s144 = smul.addr %s143, 1024
          %s145 = scalar_lea.vmem [#allocation2], %s144
          %s146 = sadd.s32 %s24, %s25
          %p147 = scmp.lt.s32.totalorder %s146, 1
          %s148 = scalar_select %p147, %s146, 1
          %s149 = smul.u32 128, %s148
          %s150 = ssub.s32 250, %s149
          %p151 = scmp.lt.s32.totalorder %s150, 128
          %s152 = scalar_select %p151, %s150, 128
          %s153 = smul.u32 8, %s152
          %s154 = ssub.s32 1024, %s153
          %s155 = sshll.u32 %s154, 4
          %156 = vsyncadd %s142, %s155
          %p157 = scmp.ne.s32.totalorder 0, %s153
          %s158 = smul.addr %s149, 8
          %s159 = scalar_lea.hbm %s0, %s158
          %s160 = smul.u32 8, %s152
          %s161 = sshll.u32 %s159, 4
          %s162 = int_to_ptr.hbm [resolvable:$true] %s161
          %s163 = sshll.u32 %s145, 4
          %s164 = int_to_ptr.vmem [resolvable:$true] %s163
          %s165 = sshll.u32 %s160, 4
          %169 = dma.hbm_to_vmem [thread:$0]  (%p157), %s162, %s165, %s164, %s142, 128, 128, 8
        $region20: #{tpu_custom_call.1} parent=15 // pred_fallthru
          _
        // Predicated region
        $region21: #{tpu_custom_call.1} parent=15 // pred_check
          %p170 = pneg %p87
        $region22: #{tpu_custom_call.1} parent=15 // pred_check_branch
          %172 = sbr.rel (%p170) target = $region24
        $region23: #{tpu_custom_call.1} parent=15 // pred_region
          %s173 = sand.u32 %s77, 1
          %s174 = scalar_lea.sflag [#allocation6], %s173
          %s175 = sand.u32 %s77, 1
          %s176 = smul.addr %s175, 1024
          %s177 = scalar_lea.vmem [#allocation5], %s176
          %s178 = sadd.s32 %s24, %s25
          %p179 = scmp.lt.s32.totalorder %s178, 1
          %s180 = scalar_select %p179, %s178, 1
          %s181 = smul.u32 128, %s180
          %s182 = ssub.s32 250, %s181
          %p183 = scmp.lt.s32.totalorder %s182, 128
          %s184 = scalar_select %p183, %s182, 128
          %s185 = smul.u32 8, %s184
          %s186 = ssub.s32 1024, %s185
          %s187 = sshll.u32 %s186, 4
          %188 = vsyncadd %s174, %s187
          %p189 = scmp.ne.s32.totalorder 0, %s185
          %s190 = smul.addr %s181, 8
          %s191 = scalar_lea.hbm %s1, %s190
          %s192 = smul.u32 8, %s184
          %s193 = sshll.u32 %s191, 4
          %s194 = int_to_ptr.hbm [resolvable:$true] %s193
          %s195 = sshll.u32 %s177, 4
          %s196 = int_to_ptr.vmem [resolvable:$true] %s195
          %s197 = sshll.u32 %s192, 4
          %201 = dma.hbm_to_vmem [thread:$0]  (%p189), %s194, %s197, %s196, %s174, 128, 128, 8
        $region24: #{tpu_custom_call.1} parent=15 // pred_fallthru
          _
      $region16: #{tpu_custom_call.1} parent=5 // pred_fallthru
        _
      %p202 = scmp.le.s32.totalorder 1, %s17
      %p203 = scmp.lt.s32.totalorder %s17, 3
      %p204 = pnand %p202, %p203
      %p205 = pneg %p204
      // Predicated region
      $region25: #{tpu_custom_call.1} parent=5 // pred_check
        _
      $region26: #{tpu_custom_call.1} parent=5 // pred_check_branch
        %207 = sbr.rel (%p204) target = $region28
      $region27: #{tpu_custom_call.1} parent=5 // pred_region
        %s208 = ssub.s32 %s17, 1
        %s209 = sand.u32 %s48, 1
        %s210 = scalar_lea.sflag [#allocation3], %s209
        %s211 = sand.u32 %s48, 1
        %s212 = smul.addr %s211, 1024
        %s213 = scalar_lea.vmem [#allocation2], %s212
        // Predicated region
        $region29: #{tpu_custom_call.1} parent=27 // pred_check
          %p214 = pneg %p61
        $region30: #{tpu_custom_call.1} parent=27 // pred_check_branch
          %216 = sbr.rel (%p214) target = $region32
        $region31: #{tpu_custom_call.1} parent=27 // pred_region
          %218 = dma.done %s210, 16384
        $region32: #{tpu_custom_call.1} parent=27 // pred_fallthru
          _
        %s219 = sand.u32 %s80, 1
        %s220 = scalar_lea.sflag [#allocation6], %s219
        %s221 = sand.u32 %s80, 1
        %s222 = smul.addr %s221, 1024
        %s223 = scalar_lea.vmem [#allocation5], %s222
        // Predicated region
        $region33: #{tpu_custom_call.1} parent=27 // pred_check
          %p224 = pneg %p93
        $region34: #{tpu_custom_call.1} parent=27 // pred_check_branch
          %226 = sbr.rel (%p224) target = $region36
        $region35: #{tpu_custom_call.1} parent=27 // pred_region
          %228 = dma.done %s220, 16384
        $region36: #{tpu_custom_call.1} parent=27 // pred_fallthru
          _
        %s229 = sand.u32 %s48, 1
        %s230 = scalar_lea.sflag [#allocation3], %s229
        %s231 = sand.u32 %s48, 1
        %s232 = smul.addr %s231, 1024
        %s233 = scalar_lea.vmem [#allocation2], %s232
        %p234 = pneg %p61
        %p235 = pneg %p58
        %s236 = sand.u32 %s80, 1
        %s237 = scalar_lea.sflag [#allocation6], %s236
        %s238 = sand.u32 %s80, 1
        %s239 = smul.addr %s238, 1024
        %s240 = scalar_lea.vmem [#allocation5], %s239
        %p241 = pneg %p93
        %p242 = pneg %p90
        %p243 = pneg %p119
        %p244 = pneg %p116
        %s245 = sand.u32 %s106, 1
        %s246 = scalar_lea.sflag [#allocation4], %s245
        %s247 = sand.u32 %s106, 1
        %s248 = smul.addr %s247, 32
        %s249 = scalar_lea.vmem [#allocation7], %s248
        %s250 = sadd.s32 %s26, %s27
        %p251 = scmp.lt.s32.totalorder %s250, 1
        %s252 = scalar_select %p251, %s250, 1
        %s253 = smul.u32 128, %s252
        %s254 = ssub.s32 250, %s253
        %p255 = scmp.lt.s32.totalorder %s254, 128
        %s256 = scalar_select %p255, %s254, 128
        %s257 = smul.u32 8, %s256
        %s258 = sadd.s32 %s26, %s27
        %p259 = scmp.lt.s32.totalorder %s258, 1
        %s260 = scalar_select %p259, %s258, 1
        %s261 = smul.u32 128, %s260
        %s262 = ssub.s32 250, %s261
        %p263 = scmp.lt.s32.totalorder %s262, 128
        %s264 = scalar_select %p263, %s262, 128
        %s265 = smul.u32 8, %s264
        %s266 = smul.u32 4, %s26
        %p267 = scmp.eq.s32.totalorder %s27, 0
        // Predicated region
        $region37: #{tpu_custom_call.1} parent=27 // pred_check
          %p268 = pneg %p267
        $region38: #{tpu_custom_call.1} parent=27 // pred_check_branch
          %270 = sbr.rel (%p268) target = $region40
        $region39: #{tpu_custom_call.1} parent=27 // pred_region
          %271 = vst [vmem:[%s249] sm:$0xff] 0.0
          %272 = vst [vmem:[%s249 + $0x8] sm:$0xff] 0.0
          %273 = vst [vmem:[%s249 + $0x10] sm:$0xff] 0.0
          %274 = vst [vmem:[%s249 + $0x18] sm:$0xff] 0.0
        $region40: #{tpu_custom_call.1} parent=27 // pred_fallthru
          _
        %v275 = vld [vmem:[%s213] sm:$0xff]
        %v276 = vld [vmem:[%s213 + $0x8] sm:$0xff]
        %v277 = vld [vmem:[%s213 + $0x10] sm:$0xff]
        %v278 = vld [vmem:[%s213 + $0x18] sm:$0xff]
        %v279 = vld [vmem:[%s213 + $0x20] sm:$0xff]
        %v280 = vld [vmem:[%s213 + $0x28] sm:$0xff]
        %v281 = vld [vmem:[%s213 + $0x30] sm:$0xff]
        %v282 = vld [vmem:[%s213 + $0x38] sm:$0xff]
        %v283 = vld [vmem:[%s213 + $0x40] sm:$0xff]
        %v284 = vld [vmem:[%s213 + $0x48] sm:$0xff]
        %v285 = vld [vmem:[%s213 + $0x50] sm:$0xff]
        %v286 = vld [vmem:[%s213 + $0x58] sm:$0xff]
        %v287 = vld [vmem:[%s213 + $0x60] sm:$0xff]
        %v288 = vld [vmem:[%s213 + $0x68] sm:$0xff]
        %v289 = vld [vmem:[%s213 + $0x70] sm:$0xff]
        %v290 = vld [vmem:[%s213 + $0x78] sm:$0xff]
        %v291 = vld [vmem:[%s213 + $0x80] sm:$0xff]
        %v292 = vld [vmem:[%s213 + $0x88] sm:$0xff]
        %v293 = vld [vmem:[%s213 + $0x90] sm:$0xff]
        %v294 = vld [vmem:[%s213 + $0x98] sm:$0xff]
        %v295 = vld [vmem:[%s213 + $0xa0] sm:$0xff]
        %v296 = vld [vmem:[%s213 + $0xa8] sm:$0xff]
        %v297 = vld [vmem:[%s213 + $0xb0] sm:$0xff]
        %v298 = vld [vmem:[%s213 + $0xb8] sm:$0xff]
        %v299 = vld [vmem:[%s213 + $0xc0] sm:$0xff]
        %v300 = vld [vmem:[%s213 + $0xc8] sm:$0xff]
        %v301 = vld [vmem:[%s213 + $0xd0] sm:$0xff]
        %v302 = vld [vmem:[%s213 + $0xd8] sm:$0xff]
        %v303 = vld [vmem:[%s213 + $0xe0] sm:$0xff]
        %v304 = vld [vmem:[%s213 + $0xe8] sm:$0xff]
        %v305 = vld [vmem:[%s213 + $0xf0] sm:$0xff]
        %v306 = vld [vmem:[%s213 + $0xf8] sm:$0xff]
        %v307 = vld [vmem:[%s213 + $0x100] sm:$0xff]
        %v308 = vld [vmem:[%s213 + $0x108] sm:$0xff]
        %v309 = vld [vmem:[%s213 + $0x110] sm:$0xff]
        %v310 = vld [vmem:[%s213 + $0x118] sm:$0xff]
        %v311 = vld [vmem:[%s213 + $0x120] sm:$0xff]
        %v312 = vld [vmem:[%s213 + $0x128] sm:$0xff]
        %v313 = vld [vmem:[%s213 + $0x130] sm:$0xff]
        %v314 = vld [vmem:[%s213 + $0x138] sm:$0xff]
        %v315 = vld [vmem:[%s213 + $0x140] sm:$0xff]
        %v316 = vld [vmem:[%s213 + $0x148] sm:$0xff]
        %v317 = vld [vmem:[%s213 + $0x150] sm:$0xff]
        %v318 = vld [vmem:[%s213 + $0x158] sm:$0xff]
        %v319 = vld [vmem:[%s213 + $0x160] sm:$0xff]
        %v320 = vld [vmem:[%s213 + $0x168] sm:$0xff]
        %v321 = vld [vmem:[%s213 + $0x170] sm:$0xff]
        %v322 = vld [vmem:[%s213 + $0x178] sm:$0xff]
        %v323 = vld [vmem:[%s213 + $0x180] sm:$0xff]
        %v324 = vld [vmem:[%s213 + $0x188] sm:$0xff]
        %v325 = vld [vmem:[%s213 + $0x190] sm:$0xff]
        %v326 = vld [vmem:[%s213 + $0x198] sm:$0xff]
        %v327 = vld [vmem:[%s213 + $0x1a0] sm:$0xff]
        %v328 = vld [vmem:[%s213 + $0x1a8] sm:$0xff]
        %v329 = vld [vmem:[%s213 + $0x1b0] sm:$0xff]
        %v330 = vld [vmem:[%s213 + $0x1b8] sm:$0xff]
        %v331 = vld [vmem:[%s213 + $0x1c0] sm:$0xff]
        %v332 = vld [vmem:[%s213 + $0x1c8] sm:$0xff]
        %v333 = vld [vmem:[%s213 + $0x1d0] sm:$0xff]
        %v334 = vld [vmem:[%s213 + $0x1d8] sm:$0xff]
        %v335 = vld [vmem:[%s213 + $0x1e0] sm:$0xff]
        %v336 = vld [vmem:[%s213 + $0x1e8] sm:$0xff]
        %v337 = vld [vmem:[%s213 + $0x1f0] sm:$0xff]
        %v338 = vld [vmem:[%s213 + $0x1f8] sm:$0xff]
        %v339 = vld [vmem:[%s213 + $0x200] sm:$0xff]
        %v340 = vld [vmem:[%s213 + $0x208] sm:$0xff]
        %v341 = vld [vmem:[%s213 + $0x210] sm:$0xff]
        %v342 = vld [vmem:[%s213 + $0x218] sm:$0xff]
        %v343 = vld [vmem:[%s213 + $0x220] sm:$0xff]
        %v344 = vld [vmem:[%s213 + $0x228] sm:$0xff]
        %v345 = vld [vmem:[%s213 + $0x230] sm:$0xff]
        %v346 = vld [vmem:[%s213 + $0x238] sm:$0xff]
        %v347 = vld [vmem:[%s213 + $0x240] sm:$0xff]
        %v348 = vld [vmem:[%s213 + $0x248] sm:$0xff]
        %v349 = vld [vmem:[%s213 + $0x250] sm:$0xff]
        %v350 = vld [vmem:[%s213 + $0x258] sm:$0xff]
        %v351 = vld [vmem:[%s213 + $0x260] sm:$0xff]
        %v352 = vld [vmem:[%s213 + $0x268] sm:$0xff]
        %v353 = vld [vmem:[%s213 + $0x270] sm:$0xff]
        %v354 = vld [vmem:[%s213 + $0x278] sm:$0xff]
        %v355 = vld [vmem:[%s213 + $0x280] sm:$0xff]
        %v356 = vld [vmem:[%s213 + $0x288] sm:$0xff]
        %v357 = vld [vmem:[%s213 + $0x290] sm:$0xff]
        %v358 = vld [vmem:[%s213 + $0x298] sm:$0xff]
        %v359 = vld [vmem:[%s213 + $0x2a0] sm:$0xff]
        %v360 = vld [vmem:[%s213 + $0x2a8] sm:$0xff]
        %v361 = vld [vmem:[%s213 + $0x2b0] sm:$0xff]
        %v362 = vld [vmem:[%s213 + $0x2b8] sm:$0xff]
        %v363 = vld [vmem:[%s213 + $0x2c0] sm:$0xff]
        %v364 = vld [vmem:[%s213 + $0x2c8] sm:$0xff]
        %v365 = vld [vmem:[%s213 + $0x2d0] sm:$0xff]
        %v366 = vld [vmem:[%s213 + $0x2d8] sm:$0xff]
        %v367 = vld [vmem:[%s213 + $0x2e0] sm:$0xff]
        %v368 = vld [vmem:[%s213 + $0x2e8] sm:$0xff]
        %v369 = vld [vmem:[%s213 + $0x2f0] sm:$0xff]
        %v370 = vld [vmem:[%s213 + $0x2f8] sm:$0xff]
        %v371 = vld [vmem:[%s213 + $0x300] sm:$0xff]
        %v372 = vld [vmem:[%s213 + $0x308] sm:$0xff]
        %v373 = vld [vmem:[%s213 + $0x310] sm:$0xff]
        %v374 = vld [vmem:[%s213 + $0x318] sm:$0xff]
        %v375 = vld [vmem:[%s213 + $0x320] sm:$0xff]
        %v376 = vld [vmem:[%s213 + $0x328] sm:$0xff]
        %v377 = vld [vmem:[%s213 + $0x330] sm:$0xff]
        %v378 = vld [vmem:[%s213 + $0x338] sm:$0xff]
        %v379 = vld [vmem:[%s213 + $0x340] sm:$0xff]
        %v380 = vld [vmem:[%s213 + $0x348] sm:$0xff]
        %v381 = vld [vmem:[%s213 + $0x350] sm:$0xff]
        %v382 = vld [vmem:[%s213 + $0x358] sm:$0xff]
        %v383 = vld [vmem:[%s213 + $0x360] sm:$0xff]
        %v384 = vld [vmem:[%s213 + $0x368] sm:$0xff]
        %v385 = vld [vmem:[%s213 + $0x370] sm:$0xff]
        %v386 = vld [vmem:[%s213 + $0x378] sm:$0xff]
        %v387 = vld [vmem:[%s213 + $0x380] sm:$0xff]
        %v388 = vld [vmem:[%s213 + $0x388] sm:$0xff]
        %v389 = vld [vmem:[%s213 + $0x390] sm:$0xff]
        %v390 = vld [vmem:[%s213 + $0x398] sm:$0xff]
        %v391 = vld [vmem:[%s213 + $0x3a0] sm:$0xff]
        %v392 = vld [vmem:[%s213 + $0x3a8] sm:$0xff]
        %v393 = vld [vmem:[%s213 + $0x3b0] sm:$0xff]
        %v394 = vld [vmem:[%s213 + $0x3b8] sm:$0xff]
        %v395 = vld [vmem:[%s213 + $0x3c0] sm:$0xff]
        %v396 = vld [vmem:[%s213 + $0x3c8] sm:$0xff]
        %v397 = vld [vmem:[%s213 + $0x3d0] sm:$0xff]
        %v398 = vld [vmem:[%s213 + $0x3d8] sm:$0xff]
        %v399 = vld [vmem:[%s213 + $0x3e0] sm:$0xff]
        %v400 = vld [vmem:[%s213 + $0x3e8] sm:$0xff]
        %v401 = vld [vmem:[%s213 + $0x3f0] sm:$0xff]
        %v402 = vld [vmem:[%s213 + $0x3f8] sm:$0xff]
        %v403 = vld [vmem:[%s223] sm:$0xff]
        %v404 = vld [vmem:[%s223 + $0x8] sm:$0xff]
        %v405 = vld [vmem:[%s223 + $0x10] sm:$0xff]
        %v406 = vld [vmem:[%s223 + $0x18] sm:$0xff]
        %v407 = vld [vmem:[%s223 + $0x20] sm:$0xff]
        %v408 = vld [vmem:[%s223 + $0x28] sm:$0xff]
        %v409 = vld [vmem:[%s223 + $0x30] sm:$0xff]
        %v410 = vld [vmem:[%s223 + $0x38] sm:$0xff]
        %v411 = vld [vmem:[%s223 + $0x40] sm:$0xff]
        %v412 = vld [vmem:[%s223 + $0x48] sm:$0xff]
        %v413 = vld [vmem:[%s223 + $0x50] sm:$0xff]
        %v414 = vld [vmem:[%s223 + $0x58] sm:$0xff]
        %v415 = vld [vmem:[%s223 + $0x60] sm:$0xff]
        %v416 = vld [vmem:[%s223 + $0x68] sm:$0xff]
        %v417 = vld [vmem:[%s223 + $0x70] sm:$0xff]
        %v418 = vld [vmem:[%s223 + $0x78] sm:$0xff]
        %v419 = vld [vmem:[%s223 + $0x80] sm:$0xff]
        %v420 = vld [vmem:[%s223 + $0x88] sm:$0xff]
        %v421 = vld [vmem:[%s223 + $0x90] sm:$0xff]
        %v422 = vld [vmem:[%s223 + $0x98] sm:$0xff]
        %v423 = vld [vmem:[%s223 + $0xa0] sm:$0xff]
        %v424 = vld [vmem:[%s223 + $0xa8] sm:$0xff]
        %v425 = vld [vmem:[%s223 + $0xb0] sm:$0xff]
        %v426 = vld [vmem:[%s223 + $0xb8] sm:$0xff]
        %v427 = vld [vmem:[%s223 + $0xc0] sm:$0xff]
        %v428 = vld [vmem:[%s223 + $0xc8] sm:$0xff]
        %v429 = vld [vmem:[%s223 + $0xd0] sm:$0xff]
        %v430 = vld [vmem:[%s223 + $0xd8] sm:$0xff]
        %v431 = vld [vmem:[%s223 + $0xe0] sm:$0xff]
        %v432 = vld [vmem:[%s223 + $0xe8] sm:$0xff]
        %v433 = vld [vmem:[%s223 + $0xf0] sm:$0xff]
        %v434 = vld [vmem:[%s223 + $0xf8] sm:$0xff]
        %v435 = vld [vmem:[%s223 + $0x100] sm:$0xff]
        %v436 = vld [vmem:[%s223 + $0x108] sm:$0xff]
        %v437 = vld [vmem:[%s223 + $0x110] sm:$0xff]
        %v438 = vld [vmem:[%s223 + $0x118] sm:$0xff]
        %v439 = vld [vmem:[%s223 + $0x120] sm:$0xff]
        %v440 = vld [vmem:[%s223 + $0x128] sm:$0xff]
        %v441 = vld [vmem:[%s223 + $0x130] sm:$0xff]
        %v442 = vld [vmem:[%s223 + $0x138] sm:$0xff]
        %v443 = vld [vmem:[%s223 + $0x140] sm:$0xff]
        %v444 = vld [vmem:[%s223 + $0x148] sm:$0xff]
        %v445 = vld [vmem:[%s223 + $0x150] sm:$0xff]
        %v446 = vld [vmem:[%s223 + $0x158] sm:$0xff]
        %v447 = vld [vmem:[%s223 + $0x160] sm:$0xff]
        %v448 = vld [vmem:[%s223 + $0x168] sm:$0xff]
        %v449 = vld [vmem:[%s223 + $0x170] sm:$0xff]
        %v450 = vld [vmem:[%s223 + $0x178] sm:$0xff]
        %v451 = vld [vmem:[%s223 + $0x180] sm:$0xff]
        %v452 = vld [vmem:[%s223 + $0x188] sm:$0xff]
        %v453 = vld [vmem:[%s223 + $0x190] sm:$0xff]
        %v454 = vld [vmem:[%s223 + $0x198] sm:$0xff]
        %v455 = vld [vmem:[%s223 + $0x1a0] sm:$0xff]
        %v456 = vld [vmem:[%s223 + $0x1a8] sm:$0xff]
        %v457 = vld [vmem:[%s223 + $0x1b0] sm:$0xff]
        %v458 = vld [vmem:[%s223 + $0x1b8] sm:$0xff]
        %v459 = vld [vmem:[%s223 + $0x1c0] sm:$0xff]
        %v460 = vld [vmem:[%s223 + $0x1c8] sm:$0xff]
        %v461 = vld [vmem:[%s223 + $0x1d0] sm:$0xff]
        %v462 = vld [vmem:[%s223 + $0x1d8] sm:$0xff]
        %v463 = vld [vmem:[%s223 + $0x1e0] sm:$0xff]
        %v464 = vld [vmem:[%s223 + $0x1e8] sm:$0xff]
        %v465 = vld [vmem:[%s223 + $0x1f0] sm:$0xff]
        %v466 = vld [vmem:[%s223 + $0x1f8] sm:$0xff]
        %v467 = vld [vmem:[%s223 + $0x200] sm:$0xff]
        %v468 = vld [vmem:[%s223 + $0x208] sm:$0xff]
        %v469 = vld [vmem:[%s223 + $0x210] sm:$0xff]
        %v470 = vld [vmem:[%s223 + $0x218] sm:$0xff]
        %v471 = vld [vmem:[%s223 + $0x220] sm:$0xff]
        %v472 = vld [vmem:[%s223 + $0x228] sm:$0xff]
        %v473 = vld [vmem:[%s223 + $0x230] sm:$0xff]
        %v474 = vld [vmem:[%s223 + $0x238] sm:$0xff]
        %v475 = vld [vmem:[%s223 + $0x240] sm:$0xff]
        %v476 = vld [vmem:[%s223 + $0x248] sm:$0xff]
        %v477 = vld [vmem:[%s223 + $0x250] sm:$0xff]
        %v478 = vld [vmem:[%s223 + $0x258] sm:$0xff]
        %v479 = vld [vmem:[%s223 + $0x260] sm:$0xff]
        %v480 = vld [vmem:[%s223 + $0x268] sm:$0xff]
        %v481 = vld [vmem:[%s223 + $0x270] sm:$0xff]
        %v482 = vld [vmem:[%s223 + $0x278] sm:$0xff]
        %v483 = vld [vmem:[%s223 + $0x280] sm:$0xff]
        %v484 = vld [vmem:[%s223 + $0x288] sm:$0xff]
        %v485 = vld [vmem:[%s223 + $0x290] sm:$0xff]
        %v486 = vld [vmem:[%s223 + $0x298] sm:$0xff]
        %v487 = vld [vmem:[%s223 + $0x2a0] sm:$0xff]
        %v488 = vld [vmem:[%s223 + $0x2a8] sm:$0xff]
        %v489 = vld [vmem:[%s223 + $0x2b0] sm:$0xff]
        %v490 = vld [vmem:[%s223 + $0x2b8] sm:$0xff]
        %v491 = vld [vmem:[%s223 + $0x2c0] sm:$0xff]
        %v492 = vld [vmem:[%s223 + $0x2c8] sm:$0xff]
        %v493 = vld [vmem:[%s223 + $0x2d0] sm:$0xff]
        %v494 = vld [vmem:[%s223 + $0x2d8] sm:$0xff]
        %v495 = vld [vmem:[%s223 + $0x2e0] sm:$0xff]
        %v496 = vld [vmem:[%s223 + $0x2e8] sm:$0xff]
        %v497 = vld [vmem:[%s223 + $0x2f0] sm:$0xff]
        %v498 = vld [vmem:[%s223 + $0x2f8] sm:$0xff]
        %v499 = vld [vmem:[%s223 + $0x300] sm:$0xff]
        %v500 = vld [vmem:[%s223 + $0x308] sm:$0xff]
        %v501 = vld [vmem:[%s223 + $0x310] sm:$0xff]
        %v502 = vld [vmem:[%s223 + $0x318] sm:$0xff]
        %v503 = vld [vmem:[%s223 + $0x320] sm:$0xff]
        %v504 = vld [vmem:[%s223 + $0x328] sm:$0xff]
        %v505 = vld [vmem:[%s223 + $0x330] sm:$0xff]
        %v506 = vld [vmem:[%s223 + $0x338] sm:$0xff]
        %v507 = vld [vmem:[%s223 + $0x340] sm:$0xff]
        %v508 = vld [vmem:[%s223 + $0x348] sm:$0xff]
        %v509 = vld [vmem:[%s223 + $0x350] sm:$0xff]
        %v510 = vld [vmem:[%s223 + $0x358] sm:$0xff]
        %v511 = vld [vmem:[%s223 + $0x360] sm:$0xff]
        %v512 = vld [vmem:[%s223 + $0x368] sm:$0xff]
        %v513 = vld [vmem:[%s223 + $0x370] sm:$0xff]
        %v514 = vld [vmem:[%s223 + $0x378] sm:$0xff]
        %v515 = vld [vmem:[%s223 + $0x380] sm:$0xff]
        %v516 = vld [vmem:[%s223 + $0x388] sm:$0xff]
        %v517 = vld [vmem:[%s223 + $0x390] sm:$0xff]
        %v518 = vld [vmem:[%s223 + $0x398] sm:$0xff]
        %v519 = vld [vmem:[%s223 + $0x3a0] sm:$0xff]
        %v520 = vld [vmem:[%s223 + $0x3a8] sm:$0xff]
        %v521 = vld [vmem:[%s223 + $0x3b0] sm:$0xff]
        %v522 = vld [vmem:[%s223 + $0x3b8] sm:$0xff]
        %v523 = vld [vmem:[%s223 + $0x3c0] sm:$0xff]
        %v524 = vld [vmem:[%s223 + $0x3c8] sm:$0xff]
        %v525 = vld [vmem:[%s223 + $0x3d0] sm:$0xff]
        %v526 = vld [vmem:[%s223 + $0x3d8] sm:$0xff]
        %v527 = vld [vmem:[%s223 + $0x3e0] sm:$0xff]
        %v528 = vld [vmem:[%s223 + $0x3e8] sm:$0xff]
        %v529 = vld [vmem:[%s223 + $0x3f0] sm:$0xff]
        %v530 = vld [vmem:[%s223 + $0x3f8] sm:$0xff]
        %v531 = vsub.f32 %v275, %v403
        %v532 = vsub.f32 %v276, %v404
        %v533 = vsub.f32 %v277, %v405
        %v534 = vsub.f32 %v278, %v406
        %v535 = vsub.f32 %v279, %v407
        %v536 = vsub.f32 %v280, %v408
        %v537 = vsub.f32 %v281, %v409
        %v538 = vsub.f32 %v282, %v410
        %v539 = vsub.f32 %v283, %v411
        %v540 = vsub.f32 %v284, %v412
        %v541 = vsub.f32 %v285, %v413
        %v542 = vsub.f32 %v286, %v414
        %v543 = vsub.f32 %v287, %v415
        %v544 = vsub.f32 %v288, %v416
        %v545 = vsub.f32 %v289, %v417
        %v546 = vsub.f32 %v290, %v418
        %v547 = vsub.f32 %v291, %v419
        %v548 = vsub.f32 %v292, %v420
        %v549 = vsub.f32 %v293, %v421
        %v550 = vsub.f32 %v294, %v422
        %v551 = vsub.f32 %v295, %v423
        %v552 = vsub.f32 %v296, %v424
        %v553 = vsub.f32 %v297, %v425
        %v554 = vsub.f32 %v298, %v426
        %v555 = vsub.f32 %v299, %v427
        %v556 = vsub.f32 %v300, %v428
        %v557 = vsub.f32 %v301, %v429
        %v558 = vsub.f32 %v302, %v430
        %v559 = vsub.f32 %v303, %v431
        %v560 = vsub.f32 %v304, %v432
        %v561 = vsub.f32 %v305, %v433
        %v562 = vsub.f32 %v306, %v434
        %v563 = vsub.f32 %v307, %v435
        %v564 = vsub.f32 %v308, %v436
        %v565 = vsub.f32 %v309, %v437
        %v566 = vsub.f32 %v310, %v438
        %v567 = vsub.f32 %v311, %v439
        %v568 = vsub.f32 %v312, %v440
        %v569 = vsub.f32 %v313, %v441
        %v570 = vsub.f32 %v314, %v442
        %v571 = vsub.f32 %v315, %v443
        %v572 = vsub.f32 %v316, %v444
        %v573 = vsub.f32 %v317, %v445
        %v574 = vsub.f32 %v318, %v446
        %v575 = vsub.f32 %v319, %v447
        %v576 = vsub.f32 %v320, %v448
        %v577 = vsub.f32 %v321, %v449
        %v578 = vsub.f32 %v322, %v450
        %v579 = vsub.f32 %v323, %v451
        %v580 = vsub.f32 %v324, %v452
        %v581 = vsub.f32 %v325, %v453
        %v582 = vsub.f32 %v326, %v454
        %v583 = vsub.f32 %v327, %v455
        %v584 = vsub.f32 %v328, %v456
        %v585 = vsub.f32 %v329, %v457
        %v586 = vsub.f32 %v330, %v458
        %v587 = vsub.f32 %v331, %v459
        %v588 = vsub.f32 %v332, %v460
        %v589 = vsub.f32 %v333, %v461
        %v590 = vsub.f32 %v334, %v462
        %v591 = vsub.f32 %v335, %v463
        %v592 = vsub.f32 %v336, %v464
        %v593 = vsub.f32 %v337, %v465
        %v594 = vsub.f32 %v338, %v466
        %v595 = vsub.f32 %v339, %v467
        %v596 = vsub.f32 %v340, %v468
        %v597 = vsub.f32 %v341, %v469
        %v598 = vsub.f32 %v342, %v470
        %v599 = vsub.f32 %v343, %v471
        %v600 = vsub.f32 %v344, %v472
        %v601 = vsub.f32 %v345, %v473
        %v602 = vsub.f32 %v346, %v474
        %v603 = vsub.f32 %v347, %v475
        %v604 = vsub.f32 %v348, %v476
        %v605 = vsub.f32 %v349, %v477
        %v606 = vsub.f32 %v350, %v478
        %v607 = vsub.f32 %v351, %v479
        %v608 = vsub.f32 %v352, %v480
        %v609 = vsub.f32 %v353, %v481
        %v610 = vsub.f32 %v354, %v482
        %v611 = vsub.f32 %v355, %v483
        %v612 = vsub.f32 %v356, %v484
        %v613 = vsub.f32 %v357, %v485
        %v614 = vsub.f32 %v358, %v486
        %v615 = vsub.f32 %v359, %v487
        %v616 = vsub.f32 %v360, %v488
        %v617 = vsub.f32 %v361, %v489
        %v618 = vsub.f32 %v362, %v490
        %v619 = vsub.f32 %v363, %v491
        %v620 = vsub.f32 %v364, %v492
        %v621 = vsub.f32 %v365, %v493
        %v622 = vsub.f32 %v366, %v494
        %v623 = vsub.f32 %v367, %v495
        %v624 = vsub.f32 %v368, %v496
        %v625 = vsub.f32 %v369, %v497
        %v626 = vsub.f32 %v370, %v498
        %v627 = vsub.f32 %v371, %v499
        %v628 = vsub.f32 %v372, %v500
        %v629 = vsub.f32 %v373, %v501
        %v630 = vsub.f32 %v374, %v502
        %v631 = vsub.f32 %v375, %v503
        %v632 = vsub.f32 %v376, %v504
        %v633 = vsub.f32 %v377, %v505
        %v634 = vsub.f32 %v378, %v506
        %v635 = vsub.f32 %v379, %v507
        %v636 = vsub.f32 %v380, %v508
        %v637 = vsub.f32 %v381, %v509
        %v638 = vsub.f32 %v382, %v510
        %v639 = vsub.f32 %v383, %v511
        %v640 = vsub.f32 %v384, %v512
        %v641 = vsub.f32 %v385, %v513
        %v642 = vsub.f32 %v386, %v514
        %v643 = vsub.f32 %v387, %v515
        %v644 = vsub.f32 %v388, %v516
        %v645 = vsub.f32 %v389, %v517
        %v646 = vsub.f32 %v390, %v518
        %v647 = vsub.f32 %v391, %v519
        %v648 = vsub.f32 %v392, %v520
        %v649 = vsub.f32 %v393, %v521
        %v650 = vsub.f32 %v394, %v522
        %v651 = vsub.f32 %v395, %v523
        %v652 = vsub.f32 %v396, %v524
        %v653 = vsub.f32 %v397, %v525
        %v654 = vsub.f32 %v398, %v526
        %v655 = vsub.f32 %v399, %v527
        %v656 = vsub.f32 %v400, %v528
        %v657 = vsub.f32 %v401, %v529
        %v658 = vsub.f32 %v402, %v530
        %v659 = vmul.f32 %v531, %v531
        %v660 = vmul.f32 %v532, %v532
        %v661 = vmul.f32 %v533, %v533
        %v662 = vmul.f32 %v534, %v534
        %v663 = vmul.f32 %v535, %v535
        %v664 = vmul.f32 %v536, %v536
        %v665 = vmul.f32 %v537, %v537
        %v666 = vmul.f32 %v538, %v538
        %v667 = vmul.f32 %v539, %v539
        %v668 = vmul.f32 %v540, %v540
        %v669 = vmul.f32 %v541, %v541
        %v670 = vmul.f32 %v542, %v542
        %v671 = vmul.f32 %v543, %v543
        %v672 = vmul.f32 %v544, %v544
        %v673 = vmul.f32 %v545, %v545
        %v674 = vmul.f32 %v546, %v546
        %v675 = vmul.f32 %v547, %v547
        %v676 = vmul.f32 %v548, %v548
        %v677 = vmul.f32 %v549, %v549
        %v678 = vmul.f32 %v550, %v550
        %v679 = vmul.f32 %v551, %v551
        %v680 = vmul.f32 %v552, %v552
        %v681 = vmul.f32 %v553, %v553
        %v682 = vmul.f32 %v554, %v554
        %v683 = vmul.f32 %v555, %v555
        %v684 = vmul.f32 %v556, %v556
        %v685 = vmul.f32 %v557, %v557
        %v686 = vmul.f32 %v558, %v558
        %v687 = vmul.f32 %v559, %v559
        %v688 = vmul.f32 %v560, %v560
        %v689 = vmul.f32 %v561, %v561
        %v690 = vmul.f32 %v562, %v562
        %v691 = vmul.f32 %v563, %v563
        %v692 = vmul.f32 %v564, %v564
        %v693 = vmul.f32 %v565, %v565
        %v694 = vmul.f32 %v566, %v566
        %v695 = vmul.f32 %v567, %v567
        %v696 = vmul.f32 %v568, %v568
        %v697 = vmul.f32 %v569, %v569
        %v698 = vmul.f32 %v570, %v570
        %v699 = vmul.f32 %v571, %v571
        %v700 = vmul.f32 %v572, %v572
        %v701 = vmul.f32 %v573, %v573
        %v702 = vmul.f32 %v574, %v574
        %v703 = vmul.f32 %v575, %v575
        %v704 = vmul.f32 %v576, %v576
        %v705 = vmul.f32 %v577, %v577
        %v706 = vmul.f32 %v578, %v578
        %v707 = vmul.f32 %v579, %v579
        %v708 = vmul.f32 %v580, %v580
        %v709 = vmul.f32 %v581, %v581
        %v710 = vmul.f32 %v582, %v582
        %v711 = vmul.f32 %v583, %v583
        %v712 = vmul.f32 %v584, %v584
        %v713 = vmul.f32 %v585, %v585
        %v714 = vmul.f32 %v586, %v586
        %v715 = vmul.f32 %v587, %v587
        %v716 = vmul.f32 %v588, %v588
        %v717 = vmul.f32 %v589, %v589
        %v718 = vmul.f32 %v590, %v590
        %v719 = vmul.f32 %v591, %v591
        %v720 = vmul.f32 %v592, %v592
        %v721 = vmul.f32 %v593, %v593
        %v722 = vmul.f32 %v594, %v594
        %v723 = vmul.f32 %v595, %v595
        %v724 = vmul.f32 %v596, %v596
        %v725 = vmul.f32 %v597, %v597
        %v726 = vmul.f32 %v598, %v598
        %v727 = vmul.f32 %v599, %v599
        %v728 = vmul.f32 %v600, %v600
        %v729 = vmul.f32 %v601, %v601
        %v730 = vmul.f32 %v602, %v602
        %v731 = vmul.f32 %v603, %v603
        %v732 = vmul.f32 %v604, %v604
        %v733 = vmul.f32 %v605, %v605
        %v734 = vmul.f32 %v606, %v606
        %v735 = vmul.f32 %v607, %v607
        %v736 = vmul.f32 %v608, %v608
        %v737 = vmul.f32 %v609, %v609
        %v738 = vmul.f32 %v610, %v610
        %v739 = vmul.f32 %v611, %v611
        %v740 = vmul.f32 %v612, %v612
        %v741 = vmul.f32 %v613, %v613
        %v742 = vmul.f32 %v614, %v614
        %v743 = vmul.f32 %v615, %v615
        %v744 = vmul.f32 %v616, %v616
        %v745 = vmul.f32 %v617, %v617
        %v746 = vmul.f32 %v618, %v618
        %v747 = vmul.f32 %v619, %v619
        %v748 = vmul.f32 %v620, %v620
        %v749 = vmul.f32 %v621, %v621
        %v750 = vmul.f32 %v622, %v622
        %v751 = vmul.f32 %v623, %v623
        %v752 = vmul.f32 %v624, %v624
        %v753 = vmul.f32 %v625, %v625
        %v754 = vmul.f32 %v626, %v626
        %v755 = vmul.f32 %v627, %v627
        %v756 = vmul.f32 %v628, %v628
        %v757 = vmul.f32 %v629, %v629
        %v758 = vmul.f32 %v630, %v630
        %v759 = vmul.f32 %v631, %v631
        %v760 = vmul.f32 %v632, %v632
        %v761 = vmul.f32 %v633, %v633
        %v762 = vmul.f32 %v634, %v634
        %v763 = vmul.f32 %v635, %v635
        %v764 = vmul.f32 %v636, %v636
        %v765 = vmul.f32 %v637, %v637
        %v766 = vmul.f32 %v638, %v638
        %v767 = vmul.f32 %v639, %v639
        %v768 = vmul.f32 %v640, %v640
        %v769 = vmul.f32 %v641, %v641
        %v770 = vmul.f32 %v642, %v642
        %v771 = vmul.f32 %v643, %v643
        %v772 = vmul.f32 %v644, %v644
        %v773 = vmul.f32 %v645, %v645
        %v774 = vmul.f32 %v646, %v646
        %v775 = vmul.f32 %v647, %v647
        %v776 = vmul.f32 %v648, %v648
        %v777 = vmul.f32 %v649, %v649
        %v778 = vmul.f32 %v650, %v650
        %v779 = vmul.f32 %v651, %v651
        %v780 = vmul.f32 %v652, %v652
        %v781 = vmul.f32 %v653, %v653
        %v782 = vmul.f32 %v654, %v654
        %v783 = vmul.f32 %v655, %v655
        %v784 = vmul.f32 %v656, %v656
        %v785 = vmul.f32 %v657, %v657
        %v786 = vmul.f32 %v658, %v658
        %s787 = sadd.s32 %s26, %s27
        %s788 = smul.u32 %s787, 1024
        %s789 = ssub.s32 2000, %s788
        %p790 = scmp.ge.s32.totalorder %s789, 1024
        // Predicated region
        $region41: #{tpu_custom_call.1} parent=27 // pred_check
          %p791 = pneg %p790
        $region42: #{tpu_custom_call.1} parent=27 // pred_check_branch
          %793 = sbr.rel (%p791) target = $region44
        $region43: #{tpu_custom_call.1} parent=27 // pred_region
          %v794 = vld [vmem:[%s249] sm:$0xff]
          %v795 = vld [vmem:[%s249 + $0x8] sm:$0xff]
          %v796 = vld [vmem:[%s249 + $0x10] sm:$0xff]
          %v797 = vld [vmem:[%s249 + $0x18] sm:$0xff]
          %v798 = vadd.f32 %v659, %v663
          %v799 = vadd.f32 %v798, %v667
          %v800 = vadd.f32 %v799, %v671
          %v801 = vadd.f32 %v800, %v675
          %v802 = vadd.f32 %v801, %v679
          %v803 = vadd.f32 %v802, %v683
          %v804 = vadd.f32 %v803, %v687
          %v805 = vadd.f32 %v804, %v691
          %v806 = vadd.f32 %v805, %v695
          %v807 = vadd.f32 %v806, %v699
          %v808 = vadd.f32 %v807, %v703
          %v809 = vadd.f32 %v808, %v707
          %v810 = vadd.f32 %v809, %v711
          %v811 = vadd.f32 %v810, %v715
          %v812 = vadd.f32 %v811, %v719
          %v813 = vadd.f32 %v812, %v723
          %v814 = vadd.f32 %v813, %v727
          %v815 = vadd.f32 %v814, %v731
          %v816 = vadd.f32 %v815, %v735
          %v817 = vadd.f32 %v816, %v739
          %v818 = vadd.f32 %v817, %v743
          %v819 = vadd.f32 %v818, %v747
          %v820 = vadd.f32 %v819, %v751
          %v821 = vadd.f32 %v820, %v755
          %v822 = vadd.f32 %v821, %v759
          %v823 = vadd.f32 %v822, %v763
          %v824 = vadd.f32 %v823, %v767
          %v825 = vadd.f32 %v824, %v771
          %v826 = vadd.f32 %v825, %v775
          %v827 = vadd.f32 %v826, %v779
          %v828 = vadd.f32 %v827, %v783
          %v829 = vadd.f32 %v660, %v664
          %v830 = vadd.f32 %v829, %v668
          %v831 = vadd.f32 %v830, %v672
          %v832 = vadd.f32 %v831, %v676
          %v833 = vadd.f32 %v832, %v680
          %v834 = vadd.f32 %v833, %v684
          %v835 = vadd.f32 %v834, %v688
          %v836 = vadd.f32 %v835, %v692
          %v837 = vadd.f32 %v836, %v696
          %v838 = vadd.f32 %v837, %v700
          %v839 = vadd.f32 %v838, %v704
          %v840 = vadd.f32 %v839, %v708
          %v841 = vadd.f32 %v840, %v712
          %v842 = vadd.f32 %v841, %v716
          %v843 = vadd.f32 %v842, %v720
          %v844 = vadd.f32 %v843, %v724
          %v845 = vadd.f32 %v844, %v728
          %v846 = vadd.f32 %v845, %v732
          %v847 = vadd.f32 %v846, %v736
          %v848 = vadd.f32 %v847, %v740
          %v849 = vadd.f32 %v848, %v744
          %v850 = vadd.f32 %v849, %v748
          %v851 = vadd.f32 %v850, %v752
          %v852 = vadd.f32 %v851, %v756
          %v853 = vadd.f32 %v852, %v760
          %v854 = vadd.f32 %v853, %v764
          %v855 = vadd.f32 %v854, %v768
          %v856 = vadd.f32 %v855, %v772
          %v857 = vadd.f32 %v856, %v776
          %v858 = vadd.f32 %v857, %v780
          %v859 = vadd.f32 %v858, %v784
          %v860 = vadd.f32 %v661, %v665
          %v861 = vadd.f32 %v860, %v669
          %v862 = vadd.f32 %v861, %v673
          %v863 = vadd.f32 %v862, %v677
          %v864 = vadd.f32 %v863, %v681
          %v865 = vadd.f32 %v864, %v685
          %v866 = vadd.f32 %v865, %v689
          %v867 = vadd.f32 %v866, %v693
          %v868 = vadd.f32 %v867, %v697
          %v869 = vadd.f32 %v868, %v701
          %v870 = vadd.f32 %v869, %v705
          %v871 = vadd.f32 %v870, %v709
          %v872 = vadd.f32 %v871, %v713
          %v873 = vadd.f32 %v872, %v717
          %v874 = vadd.f32 %v873, %v721
          %v875 = vadd.f32 %v874, %v725
          %v876 = vadd.f32 %v875, %v729
          %v877 = vadd.f32 %v876, %v733
          %v878 = vadd.f32 %v877, %v737
          %v879 = vadd.f32 %v878, %v741
          %v880 = vadd.f32 %v879, %v745
          %v881 = vadd.f32 %v880, %v749
          %v882 = vadd.f32 %v881, %v753
          %v883 = vadd.f32 %v882, %v757
          %v884 = vadd.f32 %v883, %v761
          %v885 = vadd.f32 %v884, %v765
          %v886 = vadd.f32 %v885, %v769
          %v887 = vadd.f32 %v886, %v773
          %v888 = vadd.f32 %v887, %v777
          %v889 = vadd.f32 %v888, %v781
          %v890 = vadd.f32 %v889, %v785
          %v891 = vadd.f32 %v662, %v666
          %v892 = vadd.f32 %v891, %v670
          %v893 = vadd.f32 %v892, %v674
          %v894 = vadd.f32 %v893, %v678
          %v895 = vadd.f32 %v894, %v682
          %v896 = vadd.f32 %v895, %v686
          %v897 = vadd.f32 %v896, %v690
          %v898 = vadd.f32 %v897, %v694
          %v899 = vadd.f32 %v898, %v698
          %v900 = vadd.f32 %v899, %v702
          %v901 = vadd.f32 %v900, %v706
          %v902 = vadd.f32 %v901, %v710
          %v903 = vadd.f32 %v902, %v714
          %v904 = vadd.f32 %v903, %v718
          %v905 = vadd.f32 %v904, %v722
          %v906 = vadd.f32 %v905, %v726
          %v907 = vadd.f32 %v906, %v730
          %v908 = vadd.f32 %v907, %v734
          %v909 = vadd.f32 %v908, %v738
          %v910 = vadd.f32 %v909, %v742
          %v911 = vadd.f32 %v910, %v746
          %v912 = vadd.f32 %v911, %v750
          %v913 = vadd.f32 %v912, %v754
          %v914 = vadd.f32 %v913, %v758
          %v915 = vadd.f32 %v914, %v762
          %v916 = vadd.f32 %v915, %v766
          %v917 = vadd.f32 %v916, %v770
          %v918 = vadd.f32 %v917, %v774
          %v919 = vadd.f32 %v918, %v778
          %v920 = vadd.f32 %v919, %v782
          %v921 = vadd.f32 %v920, %v786
          %v922 = vadd.f32 %v794, %v828
          %v923 = vadd.f32 %v795, %v859
          %v924 = vadd.f32 %v796, %v890
          %v925 = vadd.f32 %v797, %v921
          %926 = vst [vmem:[%s249] sm:$0xff] %v922
          %927 = vst [vmem:[%s249 + $0x8] sm:$0xff] %v923
          %928 = vst [vmem:[%s249 + $0x10] sm:$0xff] %v924
          %929 = vst [vmem:[%s249 + $0x18] sm:$0xff] %v925
        $region44: #{tpu_custom_call.1} parent=27 // pred_fallthru
          _
        %p930 = scmp.lt.s32.totalorder %s789, 1024
        // Predicated region
        $region45: #{tpu_custom_call.1} parent=27 // pred_check
          %p931 = pneg %p930
        $region46: #{tpu_custom_call.1} parent=27 // pred_check_branch
          %933 = sbr.rel (%p931) target = $region48
        $region47: #{tpu_custom_call.1} parent=27 // pred_region
          %v934 = vlaneseq
          %v935 = vshrl.u32 %v934, 7
          %v936 = vadd.s32 %v935, 8
          %v937 = vadd.s32 %v935, 16
          %v938 = vadd.s32 %v935, 24
          %v939 = vadd.s32 %v935, 32
          %v940 = vadd.s32 %v935, 40
          %v941 = vadd.s32 %v935, 48
          %v942 = vadd.s32 %v935, 56
          %v943 = vadd.s32 %v935, 64
          %v944 = vadd.s32 %v935, 72
          %v945 = vadd.s32 %v935, 80
          %v946 = vadd.s32 %v935, 88
          %v947 = vadd.s32 %v935, 96
          %v948 = vadd.s32 %v935, 104
          %v949 = vadd.s32 %v935, 112
          %v950 = vadd.s32 %v935, 120
          %v951 = vadd.s32 %v935, 128
          %v952 = vadd.s32 %v935, 136
          %v953 = vadd.s32 %v935, 144
          %v954 = vadd.s32 %v935, 152
          %v955 = vadd.s32 %v935, 160
          %v956 = vadd.s32 %v935, 168
          %v957 = vadd.s32 %v935, 176
          %v958 = vadd.s32 %v935, 184
          %v959 = vadd.s32 %v935, 192
          %v960 = vadd.s32 %v935, 200
          %v961 = vadd.s32 %v935, 208
          %v962 = vadd.s32 %v935, 216
          %v963 = vadd.s32 %v935, 224
          %v964 = vadd.s32 %v935, 232
          %v965 = vadd.s32 %v935, 240
          %v966 = vadd.s32 %v935, 248
          %v967 = vadd.s32 %v935, 256
          %v968 = vadd.s32 %v935, 264
          %v969 = vadd.s32 %v935, 272
          %v970 = vadd.s32 %v935, 280
          %v971 = vadd.s32 %v935, 288
          %v972 = vadd.s32 %v935, 296
          %v973 = vadd.s32 %v935, 304
          %v974 = vadd.s32 %v935, 312
          %v975 = vadd.s32 %v935, 320
          %v976 = vadd.s32 %v935, 328
          %v977 = vadd.s32 %v935, 336
          %v978 = vadd.s32 %v935, 344
          %v979 = vadd.s32 %v935, 352
          %v980 = vadd.s32 %v935, 360
          %v981 = vadd.s32 %v935, 368
          %v982 = vadd.s32 %v935, 376
          %v983 = vadd.s32 %v935, 384
          %v984 = vadd.s32 %v935, 392
          %v985 = vadd.s32 %v935, 400
          %v986 = vadd.s32 %v935, 408
          %v987 = vadd.s32 %v935, 416
          %v988 = vadd.s32 %v935, 424
          %v989 = vadd.s32 %v935, 432
          %v990 = vadd.s32 %v935, 440
          %v991 = vadd.s32 %v935, 448
          %v992 = vadd.s32 %v935, 456
          %v993 = vadd.s32 %v935, 464
          %v994 = vadd.s32 %v935, 472
          %v995 = vadd.s32 %v935, 480
          %v996 = vadd.s32 %v935, 488
          %v997 = vadd.s32 %v935, 496
          %v998 = vadd.s32 %v935, 504
          %v999 = vadd.s32 %v935, 512
          %v1000 = vadd.s32 %v935, 520
          %v1001 = vadd.s32 %v935, 528
          %v1002 = vadd.s32 %v935, 536
          %v1003 = vadd.s32 %v935, 544
          %v1004 = vadd.s32 %v935, 552
          %v1005 = vadd.s32 %v935, 560
          %v1006 = vadd.s32 %v935, 568
          %v1007 = vadd.s32 %v935, 576
          %v1008 = vadd.s32 %v935, 584
          %v1009 = vadd.s32 %v935, 592
          %v1010 = vadd.s32 %v935, 600
          %v1011 = vadd.s32 %v935, 608
          %v1012 = vadd.s32 %v935, 616
          %v1013 = vadd.s32 %v935, 624
          %v1014 = vadd.s32 %v935, 632
          %v1015 = vadd.s32 %v935, 640
          %v1016 = vadd.s32 %v935, 648
          %v1017 = vadd.s32 %v935, 656
          %v1018 = vadd.s32 %v935, 664
          %v1019 = vadd.s32 %v935, 672
          %v1020 = vadd.s32 %v935, 680
          %v1021 = vadd.s32 %v935, 688
          %v1022 = vadd.s32 %v935, 696
          %v1023 = vadd.s32 %v935, 704
          %v1024 = vadd.s32 %v935, 712
          %v1025 = vadd.s32 %v935, 720
          %v1026 = vadd.s32 %v935, 728
          %v1027 = vadd.s32 %v935, 736
          %v1028 = vadd.s32 %v935, 744
          %v1029 = vadd.s32 %v935, 752
          %v1030 = vadd.s32 %v935, 760
          %v1031 = vadd.s32 %v935, 768
          %v1032 = vadd.s32 %v935, 776
          %v1033 = vadd.s32 %v935, 784
          %v1034 = vadd.s32 %v935, 792
          %v1035 = vadd.s32 %v935, 800
          %v1036 = vadd.s32 %v935, 808
          %v1037 = vadd.s32 %v935, 816
          %v1038 = vadd.s32 %v935, 824
          %v1039 = vadd.s32 %v935, 832
          %v1040 = vadd.s32 %v935, 840
          %v1041 = vadd.s32 %v935, 848
          %v1042 = vadd.s32 %v935, 856
          %v1043 = vadd.s32 %v935, 864
          %v1044 = vadd.s32 %v935, 872
          %v1045 = vadd.s32 %v935, 880
          %v1046 = vadd.s32 %v935, 888
          %v1047 = vadd.s32 %v935, 896
          %v1048 = vadd.s32 %v935, 904
          %v1049 = vadd.s32 %v935, 912
          %v1050 = vadd.s32 %v935, 920
          %v1051 = vadd.s32 %v935, 928
          %v1052 = vadd.s32 %v935, 936
          %v1053 = vadd.s32 %v935, 944
          %v1054 = vadd.s32 %v935, 952
          %v1055 = vadd.s32 %v935, 960
          %v1056 = vadd.s32 %v935, 968
          %v1057 = vadd.s32 %v935, 976
          %v1058 = vadd.s32 %v935, 984
          %v1059 = vadd.s32 %v935, 992
          %v1060 = vadd.s32 %v935, 1000
          %v1061 = vadd.s32 %v935, 1008
          %v1062 = vadd.s32 %v935, 1016
          %v1063 = vstv %s789
          %vm1064 = vcmp.lt.s32.totalorder %v935, %v1063
          %vm1065 = vcmp.lt.s32.totalorder %v936, %v1063
          %vm1066 = vcmp.lt.s32.totalorder %v937, %v1063
          %vm1067 = vcmp.lt.s32.totalorder %v938, %v1063
          %vm1068 = vcmp.lt.s32.totalorder %v939, %v1063
          %vm1069 = vcmp.lt.s32.totalorder %v940, %v1063
          %vm1070 = vcmp.lt.s32.totalorder %v941, %v1063
          %vm1071 = vcmp.lt.s32.totalorder %v942, %v1063
          %vm1072 = vcmp.lt.s32.totalorder %v943, %v1063
          %vm1073 = vcmp.lt.s32.totalorder %v944, %v1063
          %vm1074 = vcmp.lt.s32.totalorder %v945, %v1063
          %vm1075 = vcmp.lt.s32.totalorder %v946, %v1063
          %vm1076 = vcmp.lt.s32.totalorder %v947, %v1063
          %vm1077 = vcmp.lt.s32.totalorder %v948, %v1063
          %vm1078 = vcmp.lt.s32.totalorder %v949, %v1063
          %vm1079 = vcmp.lt.s32.totalorder %v950, %v1063
          %vm1080 = vcmp.lt.s32.totalorder %v951, %v1063
          %vm1081 = vcmp.lt.s32.totalorder %v952, %v1063
          %vm1082 = vcmp.lt.s32.totalorder %v953, %v1063
          %vm1083 = vcmp.lt.s32.totalorder %v954, %v1063
          %vm1084 = vcmp.lt.s32.totalorder %v955, %v1063
          %vm1085 = vcmp.lt.s32.totalorder %v956, %v1063
          %vm1086 = vcmp.lt.s32.totalorder %v957, %v1063
          %vm1087 = vcmp.lt.s32.totalorder %v958, %v1063
          %vm1088 = vcmp.lt.s32.totalorder %v959, %v1063
          %vm1089 = vcmp.lt.s32.totalorder %v960, %v1063
          %vm1090 = vcmp.lt.s32.totalorder %v961, %v1063
          %vm1091 = vcmp.lt.s32.totalorder %v962, %v1063
          %vm1092 = vcmp.lt.s32.totalorder %v963, %v1063
          %vm1093 = vcmp.lt.s32.totalorder %v964, %v1063
          %vm1094 = vcmp.lt.s32.totalorder %v965, %v1063
          %vm1095 = vcmp.lt.s32.totalorder %v966, %v1063
          %vm1096 = vcmp.lt.s32.totalorder %v967, %v1063
          %vm1097 = vcmp.lt.s32.totalorder %v968, %v1063
          %vm1098 = vcmp.lt.s32.totalorder %v969, %v1063
          %vm1099 = vcmp.lt.s32.totalorder %v970, %v1063
          %vm1100 = vcmp.lt.s32.totalorder %v971, %v1063
          %vm1101 = vcmp.lt.s32.totalorder %v972, %v1063
          %vm1102 = vcmp.lt.s32.totalorder %v973, %v1063
          %vm1103 = vcmp.lt.s32.totalorder %v974, %v1063
          %vm1104 = vcmp.lt.s32.totalorder %v975, %v1063
          %vm1105 = vcmp.lt.s32.totalorder %v976, %v1063
          %vm1106 = vcmp.lt.s32.totalorder %v977, %v1063
          %vm1107 = vcmp.lt.s32.totalorder %v978, %v1063
          %vm1108 = vcmp.lt.s32.totalorder %v979, %v1063
          %vm1109 = vcmp.lt.s32.totalorder %v980, %v1063
          %vm1110 = vcmp.lt.s32.totalorder %v981, %v1063
          %vm1111 = vcmp.lt.s32.totalorder %v982, %v1063
          %vm1112 = vcmp.lt.s32.totalorder %v983, %v1063
          %vm1113 = vcmp.lt.s32.totalorder %v984, %v1063
          %vm1114 = vcmp.lt.s32.totalorder %v985, %v1063
          %vm1115 = vcmp.lt.s32.totalorder %v986, %v1063
          %vm1116 = vcmp.lt.s32.totalorder %v987, %v1063
          %vm1117 = vcmp.lt.s32.totalorder %v988, %v1063
          %vm1118 = vcmp.lt.s32.totalorder %v989, %v1063
          %vm1119 = vcmp.lt.s32.totalorder %v990, %v1063
          %vm1120 = vcmp.lt.s32.totalorder %v991, %v1063
          %vm1121 = vcmp.lt.s32.totalorder %v992, %v1063
          %vm1122 = vcmp.lt.s32.totalorder %v993, %v1063
          %vm1123 = vcmp.lt.s32.totalorder %v994, %v1063
          %vm1124 = vcmp.lt.s32.totalorder %v995, %v1063
          %vm1125 = vcmp.lt.s32.totalorder %v996, %v1063
          %vm1126 = vcmp.lt.s32.totalorder %v997, %v1063
          %vm1127 = vcmp.lt.s32.totalorder %v998, %v1063
          %vm1128 = vcmp.lt.s32.totalorder %v999, %v1063
          %vm1129 = vcmp.lt.s32.totalorder %v1000, %v1063
          %vm1130 = vcmp.lt.s32.totalorder %v1001, %v1063
          %vm1131 = vcmp.lt.s32.totalorder %v1002, %v1063
          %vm1132 = vcmp.lt.s32.totalorder %v1003, %v1063
          %vm1133 = vcmp.lt.s32.totalorder %v1004, %v1063
          %vm1134 = vcmp.lt.s32.totalorder %v1005, %v1063
          %vm1135 = vcmp.lt.s32.totalorder %v1006, %v1063
          %vm1136 = vcmp.lt.s32.totalorder %v1007, %v1063
          %vm1137 = vcmp.lt.s32.totalorder %v1008, %v1063
          %vm1138 = vcmp.lt.s32.totalorder %v1009, %v1063
          %vm1139 = vcmp.lt.s32.totalorder %v1010, %v1063
          %vm1140 = vcmp.lt.s32.totalorder %v1011, %v1063
          %vm1141 = vcmp.lt.s32.totalorder %v1012, %v1063
          %vm1142 = vcmp.lt.s32.totalorder %v1013, %v1063
          %vm1143 = vcmp.lt.s32.totalorder %v1014, %v1063
          %vm1144 = vcmp.lt.s32.totalorder %v1015, %v1063
          %vm1145 = vcmp.lt.s32.totalorder %v1016, %v1063
          %vm1146 = vcmp.lt.s32.totalorder %v1017, %v1063
          %vm1147 = vcmp.lt.s32.totalorder %v1018, %v1063
          %vm1148 = vcmp.lt.s32.totalorder %v1019, %v1063
          %vm1149 = vcmp.lt.s32.totalorder %v1020, %v1063
          %vm1150 = vcmp.lt.s32.totalorder %v1021, %v1063
          %vm1151 = vcmp.lt.s32.totalorder %v1022, %v1063
          %vm1152 = vcmp.lt.s32.totalorder %v1023, %v1063
          %vm1153 = vcmp.lt.s32.totalorder %v1024, %v1063
          %vm1154 = vcmp.lt.s32.totalorder %v1025, %v1063
          %vm1155 = vcmp.lt.s32.totalorder %v1026, %v1063
          %vm1156 = vcmp.lt.s32.totalorder %v1027, %v1063
          %vm1157 = vcmp.lt.s32.totalorder %v1028, %v1063
          %vm1158 = vcmp.lt.s32.totalorder %v1029, %v1063
          %vm1159 = vcmp.lt.s32.totalorder %v1030, %v1063
          %vm1160 = vcmp.lt.s32.totalorder %v1031, %v1063
          %vm1161 = vcmp.lt.s32.totalorder %v1032, %v1063
          %vm1162 = vcmp.lt.s32.totalorder %v1033, %v1063
          %vm1163 = vcmp.lt.s32.totalorder %v1034, %v1063
          %vm1164 = vcmp.lt.s32.totalorder %v1035, %v1063
          %vm1165 = vcmp.lt.s32.totalorder %v1036, %v1063
          %vm1166 = vcmp.lt.s32.totalorder %v1037, %v1063
          %vm1167 = vcmp.lt.s32.totalorder %v1038, %v1063
          %vm1168 = vcmp.lt.s32.totalorder %v1039, %v1063
          %vm1169 = vcmp.lt.s32.totalorder %v1040, %v1063
          %vm1170 = vcmp.lt.s32.totalorder %v1041, %v1063
          %vm1171 = vcmp.lt.s32.totalorder %v1042, %v1063
          %vm1172 = vcmp.lt.s32.totalorder %v1043, %v1063
          %vm1173 = vcmp.lt.s32.totalorder %v1044, %v1063
          %vm1174 = vcmp.lt.s32.totalorder %v1045, %v1063
          %vm1175 = vcmp.lt.s32.totalorder %v1046, %v1063
          %vm1176 = vcmp.lt.s32.totalorder %v1047, %v1063
          %vm1177 = vcmp.lt.s32.totalorder %v1048, %v1063
          %vm1178 = vcmp.lt.s32.totalorder %v1049, %v1063
          %vm1179 = vcmp.lt.s32.totalorder %v1050, %v1063
          %vm1180 = vcmp.lt.s32.totalorder %v1051, %v1063
          %vm1181 = vcmp.lt.s32.totalorder %v1052, %v1063
          %vm1182 = vcmp.lt.s32.totalorder %v1053, %v1063
          %vm1183 = vcmp.lt.s32.totalorder %v1054, %v1063
          %vm1184 = vcmp.lt.s32.totalorder %v1055, %v1063
          %vm1185 = vcmp.lt.s32.totalorder %v1056, %v1063
          %vm1186 = vcmp.lt.s32.totalorder %v1057, %v1063
          %vm1187 = vcmp.lt.s32.totalorder %v1058, %v1063
          %vm1188 = vcmp.lt.s32.totalorder %v1059, %v1063
          %vm1189 = vcmp.lt.s32.totalorder %v1060, %v1063
          %vm1190 = vcmp.lt.s32.totalorder %v1061, %v1063
          %vm1191 = vcmp.lt.s32.totalorder %v1062, %v1063
          %v1192 = vsel %vm1064, %v659, 0.0
          %v1193 = vsel %vm1065, %v660, 0.0
          %v1194 = vsel %vm1066, %v661, 0.0
          %v1195 = vsel %vm1067, %v662, 0.0
          %v1196 = vsel %vm1068, %v663, 0.0
          %v1197 = vsel %vm1069, %v664, 0.0
          %v1198 = vsel %vm1070, %v665, 0.0
          %v1199 = vsel %vm1071, %v666, 0.0
          %v1200 = vsel %vm1072, %v667, 0.0
          %v1201 = vsel %vm1073, %v668, 0.0
          %v1202 = vsel %vm1074, %v669, 0.0
          %v1203 = vsel %vm1075, %v670, 0.0
          %v1204 = vsel %vm1076, %v671, 0.0
          %v1205 = vsel %vm1077, %v672, 0.0
          %v1206 = vsel %vm1078, %v673, 0.0
          %v1207 = vsel %vm1079, %v674, 0.0
          %v1208 = vsel %vm1080, %v675, 0.0
          %v1209 = vsel %vm1081, %v676, 0.0
          %v1210 = vsel %vm1082, %v677, 0.0
          %v1211 = vsel %vm1083, %v678, 0.0
          %v1212 = vsel %vm1084, %v679, 0.0
          %v1213 = vsel %vm1085, %v680, 0.0
          %v1214 = vsel %vm1086, %v681, 0.0
          %v1215 = vsel %vm1087, %v682, 0.0
          %v1216 = vsel %vm1088, %v683, 0.0
          %v1217 = vsel %vm1089, %v684, 0.0
          %v1218 = vsel %vm1090, %v685, 0.0
          %v1219 = vsel %vm1091, %v686, 0.0
          %v1220 = vsel %vm1092, %v687, 0.0
          %v1221 = vsel %vm1093, %v688, 0.0
          %v1222 = vsel %vm1094, %v689, 0.0
          %v1223 = vsel %vm1095, %v690, 0.0
          %v1224 = vsel %vm1096, %v691, 0.0
          %v1225 = vsel %vm1097, %v692, 0.0
          %v1226 = vsel %vm1098, %v693, 0.0
          %v1227 = vsel %vm1099, %v694, 0.0
          %v1228 = vsel %vm1100, %v695, 0.0
          %v1229 = vsel %vm1101, %v696, 0.0
          %v1230 = vsel %vm1102, %v697, 0.0
          %v1231 = vsel %vm1103, %v698, 0.0
          %v1232 = vsel %vm1104, %v699, 0.0
          %v1233 = vsel %vm1105, %v700, 0.0
          %v1234 = vsel %vm1106, %v701, 0.0
          %v1235 = vsel %vm1107, %v702, 0.0
          %v1236 = vsel %vm1108, %v703, 0.0
          %v1237 = vsel %vm1109, %v704, 0.0
          %v1238 = vsel %vm1110, %v705, 0.0
          %v1239 = vsel %vm1111, %v706, 0.0
          %v1240 = vsel %vm1112, %v707, 0.0
          %v1241 = vsel %vm1113, %v708, 0.0
          %v1242 = vsel %vm1114, %v709, 0.0
          %v1243 = vsel %vm1115, %v710, 0.0
          %v1244 = vsel %vm1116, %v711, 0.0
          %v1245 = vsel %vm1117, %v712, 0.0
          %v1246 = vsel %vm1118, %v713, 0.0
          %v1247 = vsel %vm1119, %v714, 0.0
          %v1248 = vsel %vm1120, %v715, 0.0
          %v1249 = vsel %vm1121, %v716, 0.0
          %v1250 = vsel %vm1122, %v717, 0.0
          %v1251 = vsel %vm1123, %v718, 0.0
          %v1252 = vsel %vm1124, %v719, 0.0
          %v1253 = vsel %vm1125, %v720, 0.0
          %v1254 = vsel %vm1126, %v721, 0.0
          %v1255 = vsel %vm1127, %v722, 0.0
          %v1256 = vsel %vm1128, %v723, 0.0
          %v1257 = vsel %vm1129, %v724, 0.0
          %v1258 = vsel %vm1130, %v725, 0.0
          %v1259 = vsel %vm1131, %v726, 0.0
          %v1260 = vsel %vm1132, %v727, 0.0
          %v1261 = vsel %vm1133, %v728, 0.0
          %v1262 = vsel %vm1134, %v729, 0.0
          %v1263 = vsel %vm1135, %v730, 0.0
          %v1264 = vsel %vm1136, %v731, 0.0
          %v1265 = vsel %vm1137, %v732, 0.0
          %v1266 = vsel %vm1138, %v733, 0.0
          %v1267 = vsel %vm1139, %v734, 0.0
          %v1268 = vsel %vm1140, %v735, 0.0
          %v1269 = vsel %vm1141, %v736, 0.0
          %v1270 = vsel %vm1142, %v737, 0.0
          %v1271 = vsel %vm1143, %v738, 0.0
          %v1272 = vsel %vm1144, %v739, 0.0
          %v1273 = vsel %vm1145, %v740, 0.0
          %v1274 = vsel %vm1146, %v741, 0.0
          %v1275 = vsel %vm1147, %v742, 0.0
          %v1276 = vsel %vm1148, %v743, 0.0
          %v1277 = vsel %vm1149, %v744, 0.0
          %v1278 = vsel %vm1150, %v745, 0.0
          %v1279 = vsel %vm1151, %v746, 0.0
          %v1280 = vsel %vm1152, %v747, 0.0
          %v1281 = vsel %vm1153, %v748, 0.0
          %v1282 = vsel %vm1154, %v749, 0.0
          %v1283 = vsel %vm1155, %v750, 0.0
          %v1284 = vsel %vm1156, %v751, 0.0
          %v1285 = vsel %vm1157, %v752, 0.0
          %v1286 = vsel %vm1158, %v753, 0.0
          %v1287 = vsel %vm1159, %v754, 0.0
          %v1288 = vsel %vm1160, %v755, 0.0
          %v1289 = vsel %vm1161, %v756, 0.0
          %v1290 = vsel %vm1162, %v757, 0.0
          %v1291 = vsel %vm1163, %v758, 0.0
          %v1292 = vsel %vm1164, %v759, 0.0
          %v1293 = vsel %vm1165, %v760, 0.0
          %v1294 = vsel %vm1166, %v761, 0.0
          %v1295 = vsel %vm1167, %v762, 0.0
          %v1296 = vsel %vm1168, %v763, 0.0
          %v1297 = vsel %vm1169, %v764, 0.0
          %v1298 = vsel %vm1170, %v765, 0.0
          %v1299 = vsel %vm1171, %v766, 0.0
          %v1300 = vsel %vm1172, %v767, 0.0
          %v1301 = vsel %vm1173, %v768, 0.0
          %v1302 = vsel %vm1174, %v769, 0.0
          %v1303 = vsel %vm1175, %v770, 0.0
          %v1304 = vsel %vm1176, %v771, 0.0
          %v1305 = vsel %vm1177, %v772, 0.0
          %v1306 = vsel %vm1178, %v773, 0.0
          %v1307 = vsel %vm1179, %v774, 0.0
          %v1308 = vsel %vm1180, %v775, 0.0
          %v1309 = vsel %vm1181, %v776, 0.0
          %v1310 = vsel %vm1182, %v777, 0.0
          %v1311 = vsel %vm1183, %v778, 0.0
          %v1312 = vsel %vm1184, %v779, 0.0
          %v1313 = vsel %vm1185, %v780, 0.0
          %v1314 = vsel %vm1186, %v781, 0.0
          %v1315 = vsel %vm1187, %v782, 0.0
          %v1316 = vsel %vm1188, %v783, 0.0
          %v1317 = vsel %vm1189, %v784, 0.0
          %v1318 = vsel %vm1190, %v785, 0.0
          %v1319 = vsel %vm1191, %v786, 0.0
          %v1320 = vld [vmem:[%s249] sm:$0xff]
          %v1321 = vld [vmem:[%s249 + $0x8] sm:$0xff]
          %v1322 = vld [vmem:[%s249 + $0x10] sm:$0xff]
          %v1323 = vld [vmem:[%s249 + $0x18] sm:$0xff]
          %v1324 = vadd.f32 %v1192, %v1196
          %v1325 = vadd.f32 %v1324, %v1200
          %v1326 = vadd.f32 %v1325, %v1204
          %v1327 = vadd.f32 %v1326, %v1208
          %v1328 = vadd.f32 %v1327, %v1212
          %v1329 = vadd.f32 %v1328, %v1216
          %v1330 = vadd.f32 %v1329, %v1220
          %v1331 = vadd.f32 %v1330, %v1224
          %v1332 = vadd.f32 %v1331, %v1228
          %v1333 = vadd.f32 %v1332, %v1232
          %v1334 = vadd.f32 %v1333, %v1236
          %v1335 = vadd.f32 %v1334, %v1240
          %v1336 = vadd.f32 %v1335, %v1244
          %v1337 = vadd.f32 %v1336, %v1248
          %v1338 = vadd.f32 %v1337, %v1252
          %v1339 = vadd.f32 %v1338, %v1256
          %v1340 = vadd.f32 %v1339, %v1260
          %v1341 = vadd.f32 %v1340, %v1264
          %v1342 = vadd.f32 %v1341, %v1268
          %v1343 = vadd.f32 %v1342, %v1272
          %v1344 = vadd.f32 %v1343, %v1276
          %v1345 = vadd.f32 %v1344, %v1280
          %v1346 = vadd.f32 %v1345, %v1284
          %v1347 = vadd.f32 %v1346, %v1288
          %v1348 = vadd.f32 %v1347, %v1292
          %v1349 = vadd.f32 %v1348, %v1296
          %v1350 = vadd.f32 %v1349, %v1300
          %v1351 = vadd.f32 %v1350, %v1304
          %v1352 = vadd.f32 %v1351, %v1308
          %v1353 = vadd.f32 %v1352, %v1312
          %v1354 = vadd.f32 %v1353, %v1316
          %v1355 = vadd.f32 %v1193, %v1197
          %v1356 = vadd.f32 %v1355, %v1201
          %v1357 = vadd.f32 %v1356, %v1205
          %v1358 = vadd.f32 %v1357, %v1209
          %v1359 = vadd.f32 %v1358, %v1213
          %v1360 = vadd.f32 %v1359, %v1217
          %v1361 = vadd.f32 %v1360, %v1221
          %v1362 = vadd.f32 %v1361, %v1225
          %v1363 = vadd.f32 %v1362, %v1229
          %v1364 = vadd.f32 %v1363, %v1233
          %v1365 = vadd.f32 %v1364, %v1237
          %v1366 = vadd.f32 %v1365, %v1241
          %v1367 = vadd.f32 %v1366, %v1245
          %v1368 = vadd.f32 %v1367, %v1249
          %v1369 = vadd.f32 %v1368, %v1253
          %v1370 = vadd.f32 %v1369, %v1257
          %v1371 = vadd.f32 %v1370, %v1261
          %v1372 = vadd.f32 %v1371, %v1265
          %v1373 = vadd.f32 %v1372, %v1269
          %v1374 = vadd.f32 %v1373, %v1273
          %v1375 = vadd.f32 %v1374, %v1277
          %v1376 = vadd.f32 %v1375, %v1281
          %v1377 = vadd.f32 %v1376, %v1285
          %v1378 = vadd.f32 %v1377, %v1289
          %v1379 = vadd.f32 %v1378, %v1293
          %v1380 = vadd.f32 %v1379, %v1297
          %v1381 = vadd.f32 %v1380, %v1301
          %v1382 = vadd.f32 %v1381, %v1305
          %v1383 = vadd.f32 %v1382, %v1309
          %v1384 = vadd.f32 %v1383, %v1313
          %v1385 = vadd.f32 %v1384, %v1317
          %v1386 = vadd.f32 %v1194, %v1198
          %v1387 = vadd.f32 %v1386, %v1202
          %v1388 = vadd.f32 %v1387, %v1206
          %v1389 = vadd.f32 %v1388, %v1210
          %v1390 = vadd.f32 %v1389, %v1214
          %v1391 = vadd.f32 %v1390, %v1218
          %v1392 = vadd.f32 %v1391, %v1222
          %v1393 = vadd.f32 %v1392, %v1226
          %v1394 = vadd.f32 %v1393, %v1230
          %v1395 = vadd.f32 %v1394, %v1234
          %v1396 = vadd.f32 %v1395, %v1238
          %v1397 = vadd.f32 %v1396, %v1242
          %v1398 = vadd.f32 %v1397, %v1246
          %v1399 = vadd.f32 %v1398, %v1250
          %v1400 = vadd.f32 %v1399, %v1254
          %v1401 = vadd.f32 %v1400, %v1258
          %v1402 = vadd.f32 %v1401, %v1262
          %v1403 = vadd.f32 %v1402, %v1266
          %v1404 = vadd.f32 %v1403, %v1270
          %v1405 = vadd.f32 %v1404, %v1274
          %v1406 = vadd.f32 %v1405, %v1278
          %v1407 = vadd.f32 %v1406, %v1282
          %v1408 = vadd.f32 %v1407, %v1286
          %v1409 = vadd.f32 %v1408, %v1290
          %v1410 = vadd.f32 %v1409, %v1294
          %v1411 = vadd.f32 %v1410, %v1298
          %v1412 = vadd.f32 %v1411, %v1302
          %v1413 = vadd.f32 %v1412, %v1306
          %v1414 = vadd.f32 %v1413, %v1310
          %v1415 = vadd.f32 %v1414, %v1314
          %v1416 = vadd.f32 %v1415, %v1318
          %v1417 = vadd.f32 %v1195, %v1199
          %v1418 = vadd.f32 %v1417, %v1203
          %v1419 = vadd.f32 %v1418, %v1207
          %v1420 = vadd.f32 %v1419, %v1211
          %v1421 = vadd.f32 %v1420, %v1215
          %v1422 = vadd.f32 %v1421, %v1219
          %v1423 = vadd.f32 %v1422, %v1223
          %v1424 = vadd.f32 %v1423, %v1227
          %v1425 = vadd.f32 %v1424, %v1231
          %v1426 = vadd.f32 %v1425, %v1235
          %v1427 = vadd.f32 %v1426, %v1239
          %v1428 = vadd.f32 %v1427, %v1243
          %v1429 = vadd.f32 %v1428, %v1247
          %v1430 = vadd.f32 %v1429, %v1251
          %v1431 = vadd.f32 %v1430, %v1255
          %v1432 = vadd.f32 %v1431, %v1259
          %v1433 = vadd.f32 %v1432, %v1263
          %v1434 = vadd.f32 %v1433, %v1267
          %v1435 = vadd.f32 %v1434, %v1271
          %v1436 = vadd.f32 %v1435, %v1275
          %v1437 = vadd.f32 %v1436, %v1279
          %v1438 = vadd.f32 %v1437, %v1283
          %v1439 = vadd.f32 %v1438, %v1287
          %v1440 = vadd.f32 %v1439, %v1291
          %v1441 = vadd.f32 %v1440, %v1295
          %v1442 = vadd.f32 %v1441, %v1299
          %v1443 = vadd.f32 %v1442, %v1303
          %v1444 = vadd.f32 %v1443, %v1307
          %v1445 = vadd.f32 %v1444, %v1311
          %v1446 = vadd.f32 %v1445, %v1315
          %v1447 = vadd.f32 %v1446, %v1319
          %v1448 = vadd.f32 %v1320, %v1354
          %v1449 = vadd.f32 %v1321, %v1385
          %v1450 = vadd.f32 %v1322, %v1416
          %v1451 = vadd.f32 %v1323, %v1447
          %1452 = vst [vmem:[%s249] sm:$0xff] %v1448
          %1453 = vst [vmem:[%s249 + $0x8] sm:$0xff] %v1449
          %1454 = vst [vmem:[%s249 + $0x10] sm:$0xff] %v1450
          %1455 = vst [vmem:[%s249 + $0x18] sm:$0xff] %v1451
        $region48: #{tpu_custom_call.1} parent=27 // pred_fallthru
          _
        %s1456 = sand.u32 %s106, 1
        %s1457 = scalar_lea.sflag [#allocation4], %s1456
        %s1458 = sand.u32 %s106, 1
        %s1459 = smul.addr %s1458, 32
        %s1460 = scalar_lea.vmem [#allocation7], %s1459
        // Predicated region
        $region49: #{tpu_custom_call.1} parent=27 // pred_check
          %p1461 = pneg %p116
        $region50: #{tpu_custom_call.1} parent=27 // pred_check_branch
          %1463 = sbr.rel (%p1461) target = $region52
        $region51: #{tpu_custom_call.1} parent=27 // pred_region
          %s1464 = smul.u32 4, %s26
          %1466 = vsyncadd %s1457, 0
          %s1467 = smul.addr %s1464, 8
          %s1468 = scalar_lea.hbm %s2, %s1467
          %s1469 = sshll.u32 %s1460, 4
          %s1470 = int_to_ptr.vmem [resolvable:$true] %s1469
          %s1471 = sshll.u32 %s1468, 4
          %s1472 = int_to_ptr.hbm [resolvable:$true] %s1471
          %1477 = dma.vmem_to_hbm [thread:$0]  %s1470, 512, %s1472, %s1457, 128, 128, 8
        $region52: #{tpu_custom_call.1} parent=27 // pred_fallthru
          _
      $region28: #{tpu_custom_call.1} parent=5 // pred_fallthru
        _
      %p1478 = scmp.le.s32.totalorder 2, %s17
      // Predicated region
      $region53: #{tpu_custom_call.1} parent=5 // pred_check
        %p1479 = pneg %p1478
      $region54: #{tpu_custom_call.1} parent=5 // pred_check_branch
        %1481 = sbr.rel (%p1479) target = $region56
      $region55: #{tpu_custom_call.1} parent=5 // pred_region
        %s1482 = ssub.s32 %s17, 2
        // Predicated region
        $region57: #{tpu_custom_call.1} parent=55 // pred_check
          %p1483 = pneg %p122
        $region58: #{tpu_custom_call.1} parent=55 // pred_check_branch
          %1485 = sbr.rel (%p1483) target = $region60
        $region59: #{tpu_custom_call.1} parent=55 // pred_region
          %s1486 = sand.u32 %s107, 1
          %s1487 = scalar_lea.sflag [#allocation4], %s1486
          %s1488 = sand.u32 %s107, 1
          %s1489 = smul.addr %s1488, 32
          %s1490 = scalar_lea.vmem [#allocation7], %s1489
          %1492 = dma.done %s1487, 512
        $region60: #{tpu_custom_call.1} parent=55 // pred_fallthru
          _
      $region56: #{tpu_custom_call.1} parent=5 // pred_fallthru
        _
    $region6: #{tpu_custom_call.1} parent=1 // loop_footer
      %s21 = sadd.s32 1, %s17
    $region7: #{tpu_custom_call.1} parent=1 // loop_footer_branch
      %16 = sbr.rel target = $region3
    $region8: #{tpu_custom_call.1} parent=1 // loop_exit
      _
    %1493 = vsyncpa [#allocation3], 1
    %s1494 = scalar_lea.sflag [#allocation3], 1
    %1495 = vsyncpa %s1494, 1
    %1496 = vsyncpa [#allocation6], 1
    %s1497 = scalar_lea.sflag [#allocation6], 1
    %1498 = vsyncpa %s1497, 1
    %1499 = vsyncpa [#allocation4], 1
    %s1500 = scalar_lea.sflag [#allocation4], 1
    %1501 = vsyncpa %s1500, 1

</llo_original>
